<compile_context>
chip_gen: v5e
topology: v5e:2x2
jax: 0.10.0
libtpu: 0.0.40
codegen_flags: <defaults>
</compile_context>

<pallas_src>
import functools

import jax
import jax.numpy as jnp
from jax.experimental import pallas as pl
from jax.experimental.pallas import tpu as pltpu


def _mha_kernel(q_ref, k_ref, v_ref,
                wq_t_ref, wk_t_ref, wv_t_ref,
                bq_ref, bk_ref, bv_ref,
                wo_t_ref, bo_ref,
                gamma_ref, beta_ref,
                out_ref, *rest,
                n_head, eps, need_weights, matmul_dtype):
    if need_weights:
        attn_ref, ctx_ref = rest
    else:
        (ctx_ref,) = rest

    Bt, S, D = q_ref.shape
    hd = D // n_head

    def mm(a, b):
        return jnp.dot(a.astype(matmul_dtype), b.astype(matmul_dtype),
                       preferred_element_type=jnp.float32)

    # Collapse (Bt, S) so each projection is one fat MXU matmul. The softmax
    # scale 1/sqrt(hd) is already folded into wq_t / bq by the wrapper.
    q2 = q_ref[...].reshape(Bt * S, D)
    k2 = k_ref[...].reshape(Bt * S, D)
    v2 = v_ref[...].reshape(Bt * S, D)

    qp = (mm(q2, wq_t_ref[...]) + bq_ref[0]).reshape(Bt, S, D)
    kp = (mm(k2, wk_t_ref[...]) + bk_ref[0]).reshape(Bt, S, D)
    vp = (mm(v2, wv_t_ref[...]) + bv_ref[0]).reshape(Bt, S, D)

    # Per-head attention via static lane slices (no transpose relayouts).
    # Note: with small head_dim these einsums are MXU-starved by construction;
    # the D x D projections are the MXU-efficient matmuls.
    attn_acc = None
    for h in range(n_head):
        lo = h * hd
        qh = qp[:, :, lo:lo + hd]
        kh = kp[:, :, lo:lo + hd]
        vh = vp[:, :, lo:lo + hd]

        scores = jnp.einsum('bqd,bkd->bqk',
                            qh.astype(matmul_dtype), kh.astype(matmul_dtype),
                            preferred_element_type=jnp.float32)      # (Bt, S, S)
        m = jnp.max(scores, axis=-1, keepdims=True)
        e = jnp.exp(scores - m)
        denom = jnp.sum(e, axis=-1, keepdims=True)
        # EUP approximate reciprocal + one Newton step: keeps the divide off
        # the VALU while holding ~f32 accuracy for the 1e-5 attn tolerance.
        inv = pl.reciprocal(denom, approx=True)
        inv = inv * (2.0 - denom * inv)
        p = e * inv                                                   # (Bt, S, S)

        ctx_h = jnp.einsum('bqk,bkd->bqd',
                           p.astype(matmul_dtype), vh.astype(matmul_dtype),
                           preferred_element_type=jnp.float32)        # (Bt, S, hd)
        ctx_ref[:, :, lo:lo + hd] = ctx_h

        if need_weights:
            attn_acc = p if attn_acc is None else attn_acc + p

    # Output projection on the assembled context: single K=D MXU matmul.
    ctx2 = ctx_ref[...].reshape(Bt * S, D)
    attn_out = mm(ctx2, wo_t_ref[...]) + bo_ref[0]

    # Residual + LayerNorm over the feature dim.
    y = attn_out + q2
    mu = jnp.mean(y, axis=-1, keepdims=True)
    var = jnp.mean((y - mu) ** 2, axis=-1, keepdims=True)
    norm = (y - mu) * jax.lax.rsqrt(var + eps)
    out_ref[...] = (norm * gamma_ref[0] + beta_ref[0]).reshape(Bt, S, D)

    if need_weights:
        # Head-averaged weights (PyTorch average_attn_weights=True default).
        attn_ref[...] = attn_acc * (1.0 / n_head)


def _choose_block_b(B, S, D, need_weights):
    # Target >=256 projection rows per step (2x256 MXU on v6e/v7x; v5e is
    # already saturated at 128), but keep at least 2 grid steps when B >= 2
    # so the "parallel" batch axis can shard across v7x's two TensorCores.
    bb = max(1, (256 + S - 1) // max(S, 1))
    if B >= 2:
        bb = min(bb, (B + 1) // 2)
    bb = max(1, min(bb, B))

    def footprint(b):
        f4 = 4  # float32 bytes
        io = 3 * b * S * D * f4 * 2              # q, k, v inputs (double-buffered)
        io += b * S * D * f4 * 2                 # out
        if need_weights:
            io += b * S * S * f4 * 2             # attention-weights output
        w = (4 * D * D + 6 * D) * f4 * 2         # weights / biases / LN params
        live = 4 * b * S * D * f4                # qp, kp, vp, ctx scratch
        live += 4 * b * S * S * f4               # scores / e / p + attn accumulator
        live += 2 * b * S * D * f4               # residual / LayerNorm temporaries
        return io + w + live

    budget = 24 * 1024 * 1024                    # headroom for v7x's 64 MiB VMEM
    while bb > 1 and footprint(bb) > budget:
        bb -= 1
    return bb


def multi_head_attention(q, k, v, params, *, n_head, eps=1e-5, block_b=None,
                         need_weights=True, matmul_dtype=jnp.float32):
    B, S, D = q.shape
    assert D % n_head == 0, "d_model must be divisible by n_head"
    assert k.shape == (B, S, D) and v.shape == (B, S, D), \
        "kernel assumes self-attention shapes (S_q == S_k == S_v)"
    wq, wk, wv, bq, bk, bv, wo, bo, gamma, beta = params
    hd = D // n_head
    scale = 1.0 / (hd ** 0.5)

    # Pre-transpose weights once (MXU-natural (K, N) layout) and fold the
    # softmax scale into the query projection — pure wrapper-side plumbing.
    wq_t = wq.T * scale
    bq_s = bq * scale
    wk_t, wv_t, wo_t = wk.T, wv.T, wo.T

    if block_b is None:
        block_b = _choose_block_b(B, S, D, need_weights)
    block_b = int(max(1, min(block_b, B)))
    grid_b = (B + block_b - 1) // block_b
    B_pad = grid_b * block_b
    if B_pad != B:
        pad = ((0, B_pad - B), (0, 0), (0, 0))
        q_in, k_in, v_in = jnp.pad(q, pad), jnp.pad(k, pad), jnp.pad(v, pad)
    else:
        q_in, k_in, v_in = q, k, v

    kernel = functools.partial(_mha_kernel, n_head=n_head, eps=eps,
                               need_weights=need_weights,
                               matmul_dtype=matmul_dtype)

    seq_spec = pl.BlockSpec((block_b, S, D), lambda b: (b, 0, 0))
    # TODO(synk): once pipeline_mode=pl.Buffered(1) is validated on the target
    # jax build, single-buffer these grid-invariant weight/bias operands.
    w_spec = pl.BlockSpec((D, D), lambda b: (0, 0))
    vec_spec = pl.BlockSpec((1, D), lambda b: (0, 0))

    out_shape = [jax.ShapeDtypeStruct((B_pad, S, D), jnp.float32)]
    out_specs = [pl.BlockSpec((block_b, S, D), lambda b: (b, 0, 0))]
    if need_weights:
        out_shape.append(jax.ShapeDtypeStruct((B_pad, S, S), jnp.float32))
        out_specs.append(pl.BlockSpec((block_b, S, S), lambda b: (b, 0, 0)))

    results = pl.pallas_call(
        kernel,
        out_shape=tuple(out_shape),
        grid_spec=pltpu.PrefetchScalarGridSpec(
            num_scalar_prefetch=0,
            grid=(grid_b,),
            in_specs=[seq_spec, seq_spec, seq_spec,
                      w_spec, w_spec, w_spec,
                      vec_spec, vec_spec, vec_spec,
                      w_spec, vec_spec,
                      vec_spec, vec_spec],
            out_specs=out_specs,
            scratch_shapes=[pltpu.VMEM((block_b, S, D), jnp.float32)]),
        compiler_params=pltpu.CompilerParams(
            dimension_semantics=("parallel",),
            vmem_limit_bytes=64 * 1024 * 1024),
    )(q_in, k_in, v_in, wq_t, wk_t, wv_t, bq_s, bk, bv, wo_t, bo, gamma, beta)

    if need_weights:
        out, attn = results
        return out[:B], attn[:B]
    (out,) = results
    return out[:B]


def init_params(key, d_model):
    # Deterministic synthetic parameters (PyTorch-shaped):
    #   in_proj split into Wq/Wk/Wv: each (d_model, d_model), biases (d_model,)
    #   out_proj: (d_model, d_model) + bias
    #   LayerNorm: gamma=1, beta=0 (PyTorch defaults)
    ks = jax.random.split(key, 4)
    s = 0.05
    wq = s * jax.random.normal(ks[0], (d_model, d_model), jnp.float32)
    wk = s * jax.random.normal(ks[1], (d_model, d_model), jnp.float32)
    wv = s * jax.random.normal(ks[2], (d_model, d_model), jnp.float32)
    wo = s * jax.random.normal(ks[3], (d_model, d_model), jnp.float32)
    bq = jnp.zeros((1, d_model), jnp.float32)
    bk = jnp.zeros((1, d_model), jnp.float32)
    bv = jnp.zeros((1, d_model), jnp.float32)
    bo = jnp.zeros((1, d_model), jnp.float32)
    gamma = jnp.ones((1, d_model), jnp.float32)
    beta = jnp.zeros((1, d_model), jnp.float32)
    return (wq, wk, wv, bq, bk, bv, wo, bo, gamma, beta)


def reference(q, k, v, params, *, n_head, eps=1e-5):
    wq, wk, wv, bq, bk, bv, wo, bo, gamma, beta = params
    B, S, D = q.shape
    hd = D // n_head
    qp = q @ wq.T + bq[0]
    kp = k @ wk.T + bk[0]
    vp = v @ wv.T + bv[0]
    qh = qp.reshape(B, S, n_head, hd).transpose(0, 2, 1, 3)
    kh = kp.reshape(B, S, n_head, hd).transpose(0, 2, 1, 3)
    vh = vp.reshape(B, S, n_head, hd).transpose(0, 2, 1, 3)
    scores = jnp.einsum('bhqd,bhkd->bhqk', qh, kh) / (hd ** 0.5)
    p = jax.nn.softmax(scores, axis=-1)
    ctx = jnp.einsum('bhqk,bhkd->bhqd', p, vh)
    ctx = ctx.transpose(0, 2, 1, 3).reshape(B, S, D)
    attn_out = ctx @ wo.T + bo[0]
    y = attn_out + q
    mu = jnp.mean(y, axis=-1, keepdims=True)
    var = jnp.mean((y - mu) ** 2, axis=-1, keepdims=True)
    out = (y - mu) / jnp.sqrt(var + eps) * gamma[0] + beta[0]
    return out, jnp.mean(p, axis=1)


if __name__ == "__main__":
    n_head = 4
    d_model = 32
    B, S = 2, 8

    key = jax.random.PRNGKey(0)
    kq, kk, kv, kp = jax.random.split(key, 4)
    q = jax.random.normal(kq, (B, S, d_model), jnp.float32)
    k = jax.random.normal(kk, (B, S, d_model), jnp.float32)
    v = jax.random.normal(kv, (B, S, d_model), jnp.float32)
    params = init_params(kp, d_model)

    out, attn = multi_head_attention(q, k, v, params, n_head=n_head)
    jax.block_until_ready((out, attn))

    out_ref, attn_ref = reference(q, k, v, params, n_head=n_head)
    assert jnp.allclose(out, out_ref, atol=1e-4, rtol=1e-4)
    assert jnp.allclose(attn, attn_ref, atol=1e-5, rtol=1e-4)

    print("KERNEL_OK")
</pallas_src>

<mosaic_0001>
module attributes {stable_mosaic.version = 11 : i64} {
  func.func @_mha_kernel(%arg0: i32, %arg1: memref<1x8x32xf32, #tpu.memory_space<vmem>>, %arg2: memref<1x8x32xf32, #tpu.memory_space<vmem>>, %arg3: memref<1x8x32xf32, #tpu.memory_space<vmem>>, %arg4: memref<32x32xf32, #tpu.memory_space<vmem>>, %arg5: memref<32x32xf32, #tpu.memory_space<vmem>>, %arg6: memref<32x32xf32, #tpu.memory_space<vmem>>, %arg7: memref<1x32xf32, #tpu.memory_space<vmem>>, %arg8: memref<1x32xf32, #tpu.memory_space<vmem>>, %arg9: memref<1x32xf32, #tpu.memory_space<vmem>>, %arg10: memref<32x32xf32, #tpu.memory_space<vmem>>, %arg11: memref<1x32xf32, #tpu.memory_space<vmem>>, %arg12: memref<1x32xf32, #tpu.memory_space<vmem>>, %arg13: memref<1x32xf32, #tpu.memory_space<vmem>>, %arg14: memref<1x8x32xf32, #tpu.memory_space<vmem>>, %arg15: memref<1x8x8xf32, #tpu.memory_space<vmem>>, %arg16: memref<1x8x32xf32, #tpu.memory_space<vmem>>) attributes {dimension_semantics = [#tpu.dimension_semantics<parallel>], iteration_bounds = array<i64: 2>, scalar_prefetch = 0 : i64, scratch_operands = 1 : i64, tpu.core_type = #tpu.core_type<tc>, window_params = [{transform_indices = @transform_0, window_bounds = array<i64: 1, 8, 32>}, {transform_indices = @transform_1, window_bounds = array<i64: 1, 8, 32>}, {transform_indices = @transform_2, window_bounds = array<i64: 1, 8, 32>}, {pipeline_mode = #tpu.pipeline_mode<synchronous>, transform_indices = @transform_3, window_bounds = array<i64: 32, 32>}, {pipeline_mode = #tpu.pipeline_mode<synchronous>, transform_indices = @transform_4, window_bounds = array<i64: 32, 32>}, {pipeline_mode = #tpu.pipeline_mode<synchronous>, transform_indices = @transform_5, window_bounds = array<i64: 32, 32>}, {pipeline_mode = #tpu.pipeline_mode<synchronous>, transform_indices = @transform_6, window_bounds = array<i64: 1, 32>}, {pipeline_mode = #tpu.pipeline_mode<synchronous>, transform_indices = @transform_7, window_bounds = array<i64: 1, 32>}, {pipeline_mode = #tpu.pipeline_mode<synchronous>, transform_indices = @transform_8, window_bounds = array<i64: 1, 32>}, {pipeline_mode = #tpu.pipeline_mode<synchronous>, transform_indices = @transform_9, window_bounds = array<i64: 32, 32>}, {pipeline_mode = #tpu.pipeline_mode<synchronous>, transform_indices = @transform_10, window_bounds = array<i64: 1, 32>}, {pipeline_mode = #tpu.pipeline_mode<synchronous>, transform_indices = @transform_11, window_bounds = array<i64: 1, 32>}, {pipeline_mode = #tpu.pipeline_mode<synchronous>, transform_indices = @transform_12, window_bounds = array<i64: 1, 32>}, {transform_indices = @transform_13, window_bounds = array<i64: 1, 8, 32>}, {transform_indices = @transform_14, window_bounds = array<i64: 1, 8, 8>}]} {
    %c0 = arith.constant 0 : index
    %c0_0 = arith.constant 0 : index
    %c0_1 = arith.constant 0 : index
    %0 = vector.load %arg1[%c0, %c0_0, %c0_1] : memref<1x8x32xf32, #tpu.memory_space<vmem>>, vector<1x8x32xf32>
    %1 = vector.shape_cast %0 : vector<1x8x32xf32> to vector<8x32xf32>
    %c0_2 = arith.constant 0 : index
    %c0_3 = arith.constant 0 : index
    %c0_4 = arith.constant 0 : index
    %2 = vector.load %arg2[%c0_2, %c0_3, %c0_4] : memref<1x8x32xf32, #tpu.memory_space<vmem>>, vector<1x8x32xf32>
    %3 = vector.shape_cast %2 : vector<1x8x32xf32> to vector<8x32xf32>
    %c0_5 = arith.constant 0 : index
    %c0_6 = arith.constant 0 : index
    %c0_7 = arith.constant 0 : index
    %4 = vector.load %arg3[%c0_5, %c0_6, %c0_7] : memref<1x8x32xf32, #tpu.memory_space<vmem>>, vector<1x8x32xf32>
    %5 = vector.shape_cast %4 : vector<1x8x32xf32> to vector<8x32xf32>
    %c0_8 = arith.constant 0 : index
    %c0_9 = arith.constant 0 : index
    %6 = vector.load %arg4[%c0_8, %c0_9] : memref<32x32xf32, #tpu.memory_space<vmem>>, vector<32x32xf32>
    %cst = arith.constant dense<0.000000e+00> : vector<8x32xf32>
    %7 = tpu.matmul %1, %6, %cst {dimension_numbers = #tpu.dot_dimension_numbers<[1], [0], [0], [1], [0, 0, 1, 1], [], []>} : vector<8x32xf32>, vector<32x32xf32>, vector<8x32xf32> -> vector<8x32xf32>
    %c0_10 = arith.constant 0 : index
    %c0_11 = arith.constant 0 : index
    %8 = vector.load %arg7[%c0_10, %c0_11] : memref<1x32xf32, #tpu.memory_space<vmem>>, vector<1x32xf32>
    %9 = vector.shape_cast %8 : vector<1x32xf32> to vector<32xf32>
    %10 = vector.shape_cast %9 : vector<32xf32> to vector<1x32xf32>
    %11 = vector.broadcast %10 : vector<1x32xf32> to vector<8x32xf32>
    %12 = arith.addf %7, %11 : vector<8x32xf32>
    %13 = vector.shape_cast %12 : vector<8x32xf32> to vector<1x8x32xf32>
    %c0_12 = arith.constant 0 : index
    %c0_13 = arith.constant 0 : index
    %14 = vector.load %arg5[%c0_12, %c0_13] : memref<32x32xf32, #tpu.memory_space<vmem>>, vector<32x32xf32>
    %cst_14 = arith.constant dense<0.000000e+00> : vector<8x32xf32>
    %15 = tpu.matmul %3, %14, %cst_14 {dimension_numbers = #tpu.dot_dimension_numbers<[1], [0], [0], [1], [0, 0, 1, 1], [], []>} : vector<8x32xf32>, vector<32x32xf32>, vector<8x32xf32> -> vector<8x32xf32>
    %c0_15 = arith.constant 0 : index
    %c0_16 = arith.constant 0 : index
    %16 = vector.load %arg8[%c0_15, %c0_16] : memref<1x32xf32, #tpu.memory_space<vmem>>, vector<1x32xf32>
    %17 = vector.shape_cast %16 : vector<1x32xf32> to vector<32xf32>
    %18 = vector.shape_cast %17 : vector<32xf32> to vector<1x32xf32>
    %19 = vector.broadcast %18 : vector<1x32xf32> to vector<8x32xf32>
    %20 = arith.addf %15, %19 : vector<8x32xf32>
    %21 = vector.shape_cast %20 : vector<8x32xf32> to vector<1x8x32xf32>
    %c0_17 = arith.constant 0 : index
    %c0_18 = arith.constant 0 : index
    %22 = vector.load %arg6[%c0_17, %c0_18] : memref<32x32xf32, #tpu.memory_space<vmem>>, vector<32x32xf32>
    %cst_19 = arith.constant dense<0.000000e+00> : vector<8x32xf32>
    %23 = tpu.matmul %5, %22, %cst_19 {dimension_numbers = #tpu.dot_dimension_numbers<[1], [0], [0], [1], [0, 0, 1, 1], [], []>} : vector<8x32xf32>, vector<32x32xf32>, vector<8x32xf32> -> vector<8x32xf32>
    %c0_20 = arith.constant 0 : index
    %c0_21 = arith.constant 0 : index
    %24 = vector.load %arg9[%c0_20, %c0_21] : memref<1x32xf32, #tpu.memory_space<vmem>>, vector<1x32xf32>
    %25 = vector.shape_cast %24 : vector<1x32xf32> to vector<32xf32>
    %26 = vector.shape_cast %25 : vector<32xf32> to vector<1x32xf32>
    %27 = vector.broadcast %26 : vector<1x32xf32> to vector<8x32xf32>
    %28 = arith.addf %23, %27 : vector<8x32xf32>
    %29 = vector.shape_cast %28 : vector<8x32xf32> to vector<1x8x32xf32>
    %30 = vector.extract_strided_slice %13 {offsets = [0, 0, 0], sizes = [1, 8, 8], strides = [1, 1, 1]} : vector<1x8x32xf32> to vector<1x8x8xf32>
    %31 = vector.extract_strided_slice %21 {offsets = [0, 0, 0], sizes = [1, 8, 8], strides = [1, 1, 1]} : vector<1x8x32xf32> to vector<1x8x8xf32>
    %32 = vector.extract_strided_slice %29 {offsets = [0, 0, 0], sizes = [1, 8, 8], strides = [1, 1, 1]} : vector<1x8x32xf32> to vector<1x8x8xf32>
    "tpu.trace_start"() <{level = 10 : i32, message = "bqd,bkd->bqk"}> : () -> ()
    %cst_22 = arith.constant dense<0.000000e+00> : vector<1x8x8xf32>
    %33 = tpu.matmul %30, %31, %cst_22 {dimension_numbers = #tpu.dot_dimension_numbers<[2], [2], [1], [1], [0, 0, 0, 1, 1, 1], [0], [0]>} : vector<1x8x8xf32>, vector<1x8x8xf32>, vector<1x8x8xf32> -> vector<1x8x8xf32>
    "tpu.trace_stop"() : () -> ()
    %cst_23 = arith.constant dense<0xFF800000> : vector<1x8xf32>
    %34 = vector.multi_reduction <maximumf>, %33, %cst_23 [2] : vector<1x8x8xf32> to vector<1x8xf32>
    %35 = vector.shape_cast %34 : vector<1x8xf32> to vector<1x8x1xf32>
    %36 = vector.broadcast %35 : vector<1x8x1xf32> to vector<1x8x8xf32>
    %37 = arith.subf %33, %36 : vector<1x8x8xf32>
    %38 = math.exp %37 : vector<1x8x8xf32>
    %cst_24 = arith.constant dense<0.000000e+00> : vector<1x8xf32>
    %39 = vector.multi_reduction <add>, %38, %cst_24 [2] : vector<1x8x8xf32> to vector<1x8xf32>
    %40 = vector.shape_cast %39 : vector<1x8xf32> to vector<1x8x1xf32>
    %41 = tpu.reciprocal %40 {approx = true} : vector<1x8x1xf32> -> vector<1x8x1xf32>
    %42 = arith.mulf %40, %41 : vector<1x8x1xf32>
    %cst_25 = arith.constant 2.000000e+00 : f32
    %43 = vector.broadcast %cst_25 : f32 to vector<1x8x1xf32>
    %44 = arith.subf %43, %42 : vector<1x8x1xf32>
    %45 = arith.mulf %41, %44 : vector<1x8x1xf32>
    %46 = vector.broadcast %45 : vector<1x8x1xf32> to vector<1x8x8xf32>
    %47 = arith.mulf %38, %46 : vector<1x8x8xf32>
    "tpu.trace_start"() <{level = 10 : i32, message = "bqk,bkd->bqd"}> : () -> ()
    %cst_26 = arith.constant dense<0.000000e+00> : vector<1x8x8xf32>
    %48 = tpu.matmul %47, %32, %cst_26 {dimension_numbers = #tpu.dot_dimension_numbers<[2], [1], [1], [2], [0, 0, 0, 1, 1, 2], [0], [0]>} : vector<1x8x8xf32>, vector<1x8x8xf32>, vector<1x8x8xf32> -> vector<1x8x8xf32>
    "tpu.trace_stop"() : () -> ()
    %c0_27 = arith.constant 0 : index
    %c0_28 = arith.constant 0 : index
    %c0_29 = arith.constant 0 : index
    %49 = vector.load %arg16[%c0_27, %c0_28, %c0_29] : memref<1x8x32xf32, #tpu.memory_space<vmem>>, vector<1x8x8xf32>
    tpu.vector_store %arg16[%c0_27, %c0_28, %c0_29], %48 {strides = array<i32>} : memref<1x8x32xf32, #tpu.memory_space<vmem>>, vector<1x8x8xf32>,
    %50 = vector.extract_strided_slice %13 {offsets = [0, 0, 8], sizes = [1, 8, 8], strides = [1, 1, 1]} : vector<1x8x32xf32> to vector<1x8x8xf32>
    %51 = vector.extract_strided_slice %21 {offsets = [0, 0, 8], sizes = [1, 8, 8], strides = [1, 1, 1]} : vector<1x8x32xf32> to vector<1x8x8xf32>
    %52 = vector.extract_strided_slice %29 {offsets = [0, 0, 8], sizes = [1, 8, 8], strides = [1, 1, 1]} : vector<1x8x32xf32> to vector<1x8x8xf32>
    "tpu.trace_start"() <{level = 10 : i32, message = "bqd,bkd->bqk"}> : () -> ()
    %cst_30 = arith.constant dense<0.000000e+00> : vector<1x8x8xf32>
    %53 = tpu.matmul %50, %51, %cst_30 {dimension_numbers = #tpu.dot_dimension_numbers<[2], [2], [1], [1], [0, 0, 0, 1, 1, 1], [0], [0]>} : vector<1x8x8xf32>, vector<1x8x8xf32>, vector<1x8x8xf32> -> vector<1x8x8xf32>
    "tpu.trace_stop"() : () -> ()
    %cst_31 = arith.constant dense<0xFF800000> : vector<1x8xf32>
    %54 = vector.multi_reduction <maximumf>, %53, %cst_31 [2] : vector<1x8x8xf32> to vector<1x8xf32>
    %55 = vector.shape_cast %54 : vector<1x8xf32> to vector<1x8x1xf32>
    %56 = vector.broadcast %55 : vector<1x8x1xf32> to vector<1x8x8xf32>
    %57 = arith.subf %53, %56 : vector<1x8x8xf32>
    %58 = math.exp %57 : vector<1x8x8xf32>
    %cst_32 = arith.constant dense<0.000000e+00> : vector<1x8xf32>
    %59 = vector.multi_reduction <add>, %58, %cst_32 [2] : vector<1x8x8xf32> to vector<1x8xf32>
    %60 = vector.shape_cast %59 : vector<1x8xf32> to vector<1x8x1xf32>
    %61 = tpu.reciprocal %60 {approx = true} : vector<1x8x1xf32> -> vector<1x8x1xf32>
    %62 = arith.mulf %60, %61 : vector<1x8x1xf32>
    %cst_33 = arith.constant 2.000000e+00 : f32
    %63 = vector.broadcast %cst_33 : f32 to vector<1x8x1xf32>
    %64 = arith.subf %63, %62 : vector<1x8x1xf32>
    %65 = arith.mulf %61, %64 : vector<1x8x1xf32>
    %66 = vector.broadcast %65 : vector<1x8x1xf32> to vector<1x8x8xf32>
    %67 = arith.mulf %58, %66 : vector<1x8x8xf32>
    "tpu.trace_start"() <{level = 10 : i32, message = "bqk,bkd->bqd"}> : () -> ()
    %cst_34 = arith.constant dense<0.000000e+00> : vector<1x8x8xf32>
    %68 = tpu.matmul %67, %52, %cst_34 {dimension_numbers = #tpu.dot_dimension_numbers<[2], [1], [1], [2], [0, 0, 0, 1, 1, 2], [0], [0]>} : vector<1x8x8xf32>, vector<1x8x8xf32>, vector<1x8x8xf32> -> vector<1x8x8xf32>
    "tpu.trace_stop"() : () -> ()
    %c0_35 = arith.constant 0 : index
    %c0_36 = arith.constant 0 : index
    %c8 = arith.constant 8 : index
    %69 = vector.load %arg16[%c0_35, %c0_36, %c8] : memref<1x8x32xf32, #tpu.memory_space<vmem>>, vector<1x8x8xf32>
    tpu.vector_store %arg16[%c0_35, %c0_36, %c8], %68 {strides = array<i32>} : memref<1x8x32xf32, #tpu.memory_space<vmem>>, vector<1x8x8xf32>,
    %70 = arith.addf %47, %67 : vector<1x8x8xf32>
    %71 = vector.extract_strided_slice %13 {offsets = [0, 0, 16], sizes = [1, 8, 8], strides = [1, 1, 1]} : vector<1x8x32xf32> to vector<1x8x8xf32>
    %72 = vector.extract_strided_slice %21 {offsets = [0, 0, 16], sizes = [1, 8, 8], strides = [1, 1, 1]} : vector<1x8x32xf32> to vector<1x8x8xf32>
    %73 = vector.extract_strided_slice %29 {offsets = [0, 0, 16], sizes = [1, 8, 8], strides = [1, 1, 1]} : vector<1x8x32xf32> to vector<1x8x8xf32>
    "tpu.trace_start"() <{level = 10 : i32, message = "bqd,bkd->bqk"}> : () -> ()
    %cst_37 = arith.constant dense<0.000000e+00> : vector<1x8x8xf32>
    %74 = tpu.matmul %71, %72, %cst_37 {dimension_numbers = #tpu.dot_dimension_numbers<[2], [2], [1], [1], [0, 0, 0, 1, 1, 1], [0], [0]>} : vector<1x8x8xf32>, vector<1x8x8xf32>, vector<1x8x8xf32> -> vector<1x8x8xf32>
    "tpu.trace_stop"() : () -> ()
    %cst_38 = arith.constant dense<0xFF800000> : vector<1x8xf32>
    %75 = vector.multi_reduction <maximumf>, %74, %cst_38 [2] : vector<1x8x8xf32> to vector<1x8xf32>
    %76 = vector.shape_cast %75 : vector<1x8xf32> to vector<1x8x1xf32>
    %77 = vector.broadcast %76 : vector<1x8x1xf32> to vector<1x8x8xf32>
    %78 = arith.subf %74, %77 : vector<1x8x8xf32>
    %79 = math.exp %78 : vector<1x8x8xf32>
    %cst_39 = arith.constant dense<0.000000e+00> : vector<1x8xf32>
    %80 = vector.multi_reduction <add>, %79, %cst_39 [2] : vector<1x8x8xf32> to vector<1x8xf32>
    %81 = vector.shape_cast %80 : vector<1x8xf32> to vector<1x8x1xf32>
    %82 = tpu.reciprocal %81 {approx = true} : vector<1x8x1xf32> -> vector<1x8x1xf32>
    %83 = arith.mulf %81, %82 : vector<1x8x1xf32>
    %cst_40 = arith.constant 2.000000e+00 : f32
    %84 = vector.broadcast %cst_40 : f32 to vector<1x8x1xf32>
    %85 = arith.subf %84, %83 : vector<1x8x1xf32>
    %86 = arith.mulf %82, %85 : vector<1x8x1xf32>
    %87 = vector.broadcast %86 : vector<1x8x1xf32> to vector<1x8x8xf32>
    %88 = arith.mulf %79, %87 : vector<1x8x8xf32>
    "tpu.trace_start"() <{level = 10 : i32, message = "bqk,bkd->bqd"}> : () -> ()
    %cst_41 = arith.constant dense<0.000000e+00> : vector<1x8x8xf32>
    %89 = tpu.matmul %88, %73, %cst_41 {dimension_numbers = #tpu.dot_dimension_numbers<[2], [1], [1], [2], [0, 0, 0, 1, 1, 2], [0], [0]>} : vector<1x8x8xf32>, vector<1x8x8xf32>, vector<1x8x8xf32> -> vector<1x8x8xf32>
    "tpu.trace_stop"() : () -> ()
    %c0_42 = arith.constant 0 : index
    %c0_43 = arith.constant 0 : index
    %c16 = arith.constant 16 : index
    %90 = vector.load %arg16[%c0_42, %c0_43, %c16] : memref<1x8x32xf32, #tpu.memory_space<vmem>>, vector<1x8x8xf32>
    tpu.vector_store %arg16[%c0_42, %c0_43, %c16], %89 {strides = array<i32>} : memref<1x8x32xf32, #tpu.memory_space<vmem>>, vector<1x8x8xf32>,
    %91 = arith.addf %70, %88 : vector<1x8x8xf32>
    %92 = vector.extract_strided_slice %13 {offsets = [0, 0, 24], sizes = [1, 8, 8], strides = [1, 1, 1]} : vector<1x8x32xf32> to vector<1x8x8xf32>
    %93 = vector.extract_strided_slice %21 {offsets = [0, 0, 24], sizes = [1, 8, 8], strides = [1, 1, 1]} : vector<1x8x32xf32> to vector<1x8x8xf32>
    %94 = vector.extract_strided_slice %29 {offsets = [0, 0, 24], sizes = [1, 8, 8], strides = [1, 1, 1]} : vector<1x8x32xf32> to vector<1x8x8xf32>
    "tpu.trace_start"() <{level = 10 : i32, message = "bqd,bkd->bqk"}> : () -> ()
    %cst_44 = arith.constant dense<0.000000e+00> : vector<1x8x8xf32>
    %95 = tpu.matmul %92, %93, %cst_44 {dimension_numbers = #tpu.dot_dimension_numbers<[2], [2], [1], [1], [0, 0, 0, 1, 1, 1], [0], [0]>} : vector<1x8x8xf32>, vector<1x8x8xf32>, vector<1x8x8xf32> -> vector<1x8x8xf32>
    "tpu.trace_stop"() : () -> ()
    %cst_45 = arith.constant dense<0xFF800000> : vector<1x8xf32>
    %96 = vector.multi_reduction <maximumf>, %95, %cst_45 [2] : vector<1x8x8xf32> to vector<1x8xf32>
    %97 = vector.shape_cast %96 : vector<1x8xf32> to vector<1x8x1xf32>
    %98 = vector.broadcast %97 : vector<1x8x1xf32> to vector<1x8x8xf32>
    %99 = arith.subf %95, %98 : vector<1x8x8xf32>
    %100 = math.exp %99 : vector<1x8x8xf32>
    %cst_46 = arith.constant dense<0.000000e+00> : vector<1x8xf32>
    %101 = vector.multi_reduction <add>, %100, %cst_46 [2] : vector<1x8x8xf32> to vector<1x8xf32>
    %102 = vector.shape_cast %101 : vector<1x8xf32> to vector<1x8x1xf32>
    %103 = tpu.reciprocal %102 {approx = true} : vector<1x8x1xf32> -> vector<1x8x1xf32>
    %104 = arith.mulf %102, %103 : vector<1x8x1xf32>
    %cst_47 = arith.constant 2.000000e+00 : f32
    %105 = vector.broadcast %cst_47 : f32 to vector<1x8x1xf32>
    %106 = arith.subf %105, %104 : vector<1x8x1xf32>
    %107 = arith.mulf %103, %106 : vector<1x8x1xf32>
    %108 = vector.broadcast %107 : vector<1x8x1xf32> to vector<1x8x8xf32>
    %109 = arith.mulf %100, %108 : vector<1x8x8xf32>
    "tpu.trace_start"() <{level = 10 : i32, message = "bqk,bkd->bqd"}> : () -> ()
    %cst_48 = arith.constant dense<0.000000e+00> : vector<1x8x8xf32>
    %110 = tpu.matmul %109, %94, %cst_48 {dimension_numbers = #tpu.dot_dimension_numbers<[2], [1], [1], [2], [0, 0, 0, 1, 1, 2], [0], [0]>} : vector<1x8x8xf32>, vector<1x8x8xf32>, vector<1x8x8xf32> -> vector<1x8x8xf32>
    "tpu.trace_stop"() : () -> ()
    %c0_49 = arith.constant 0 : index
    %c0_50 = arith.constant 0 : index
    %c24 = arith.constant 24 : index
    %111 = vector.load %arg16[%c0_49, %c0_50, %c24] : memref<1x8x32xf32, #tpu.memory_space<vmem>>, vector<1x8x8xf32>
    tpu.vector_store %arg16[%c0_49, %c0_50, %c24], %110 {strides = array<i32>} : memref<1x8x32xf32, #tpu.memory_space<vmem>>, vector<1x8x8xf32>,
    %112 = arith.addf %91, %109 : vector<1x8x8xf32>
    %c0_51 = arith.constant 0 : index
    %c0_52 = arith.constant 0 : index
    %c0_53 = arith.constant 0 : index
    %113 = vector.load %arg16[%c0_51, %c0_52, %c0_53] : memref<1x8x32xf32, #tpu.memory_space<vmem>>, vector<1x8x32xf32>
    %114 = vector.shape_cast %113 : vector<1x8x32xf32> to vector<8x32xf32>
    %c0_54 = arith.constant 0 : index
    %c0_55 = arith.constant 0 : index
    %115 = vector.load %arg10[%c0_54, %c0_55] : memref<32x32xf32, #tpu.memory_space<vmem>>, vector<32x32xf32>
    %cst_56 = arith.constant dense<0.000000e+00> : vector<8x32xf32>
    %116 = tpu.matmul %114, %115, %cst_56 {dimension_numbers = #tpu.dot_dimension_numbers<[1], [0], [0], [1], [0, 0, 1, 1], [], []>} : vector<8x32xf32>, vector<32x32xf32>, vector<8x32xf32> -> vector<8x32xf32>
    %c0_57 = arith.constant 0 : index
    %c0_58 = arith.constant 0 : index
    %117 = vector.load %arg11[%c0_57, %c0_58] : memref<1x32xf32, #tpu.memory_space<vmem>>, vector<1x32xf32>
    %118 = vector.shape_cast %117 : vector<1x32xf32> to vector<32xf32>
    %119 = vector.shape_cast %118 : vector<32xf32> to vector<1x32xf32>
    %120 = vector.broadcast %119 : vector<1x32xf32> to vector<8x32xf32>
    %121 = arith.addf %116, %120 : vector<8x32xf32>
    %122 = arith.addf %121, %1 : vector<8x32xf32>
    %cst_59 = arith.constant dense<0.000000e+00> : vector<8xf32>
    %123 = vector.multi_reduction <add>, %122, %cst_59 [1] : vector<8x32xf32> to vector<8xf32>
    %124 = vector.shape_cast %123 : vector<8xf32> to vector<8x1xf32>
    %cst_60 = arith.constant 3.200000e+01 : f32
    %125 = vector.broadcast %cst_60 : f32 to vector<8x1xf32>
    %126 = arith.divf %124, %125 : vector<8x1xf32>
    %127 = vector.broadcast %126 : vector<8x1xf32> to vector<8x32xf32>
    %128 = arith.subf %122, %127 : vector<8x32xf32>
    %129 = arith.mulf %128, %128 : vector<8x32xf32>
    %cst_61 = arith.constant dense<0.000000e+00> : vector<8xf32>
    %130 = vector.multi_reduction <add>, %129, %cst_61 [1] : vector<8x32xf32> to vector<8xf32>
    %131 = vector.shape_cast %130 : vector<8xf32> to vector<8x1xf32>
    %cst_62 = arith.constant 3.200000e+01 : f32
    %132 = vector.broadcast %cst_62 : f32 to vector<8x1xf32>
    %133 = arith.divf %131, %132 : vector<8x1xf32>
    %134 = vector.broadcast %126 : vector<8x1xf32> to vector<8x32xf32>
    %135 = arith.subf %122, %134 : vector<8x32xf32>
    %cst_63 = arith.constant 9.99999974E-6 : f32
    %136 = vector.broadcast %cst_63 : f32 to vector<8x1xf32>
    %137 = arith.addf %133, %136 : vector<8x1xf32>
    %138 = math.rsqrt %137 : vector<8x1xf32>
    %139 = vector.broadcast %138 : vector<8x1xf32> to vector<8x32xf32>
    %140 = arith.mulf %135, %139 : vector<8x32xf32>
    %c0_64 = arith.constant 0 : index
    %c0_65 = arith.constant 0 : index
    %141 = vector.load %arg12[%c0_64, %c0_65] : memref<1x32xf32, #tpu.memory_space<vmem>>, vector<1x32xf32>
    %142 = vector.shape_cast %141 : vector<1x32xf32> to vector<32xf32>
    %143 = vector.shape_cast %142 : vector<32xf32> to vector<1x32xf32>
    %144 = vector.broadcast %143 : vector<1x32xf32> to vector<8x32xf32>
    %145 = arith.mulf %140, %144 : vector<8x32xf32>
    %c0_66 = arith.constant 0 : index
    %c0_67 = arith.constant 0 : index
    %146 = vector.load %arg13[%c0_66, %c0_67] : memref<1x32xf32, #tpu.memory_space<vmem>>, vector<1x32xf32>
    %147 = vector.shape_cast %146 : vector<1x32xf32> to vector<32xf32>
    %148 = vector.shape_cast %147 : vector<32xf32> to vector<1x32xf32>
    %149 = vector.broadcast %148 : vector<1x32xf32> to vector<8x32xf32>
    %150 = arith.addf %145, %149 : vector<8x32xf32>
    %151 = vector.shape_cast %150 : vector<8x32xf32> to vector<1x8x32xf32>
    %c0_68 = arith.constant 0 : index
    %c0_69 = arith.constant 0 : index
    %c0_70 = arith.constant 0 : index
    %152 = vector.load %arg14[%c0_68, %c0_69, %c0_70] : memref<1x8x32xf32, #tpu.memory_space<vmem>>, vector<1x8x32xf32>
    tpu.vector_store %arg14[%c0_68, %c0_69, %c0_70], %151 {strides = array<i32>} : memref<1x8x32xf32, #tpu.memory_space<vmem>>, vector<1x8x32xf32>,
    %cst_71 = arith.constant 2.500000e-01 : f32
    %153 = vector.broadcast %cst_71 : f32 to vector<1x8x8xf32>
    %154 = arith.mulf %112, %153 : vector<1x8x8xf32>
    %c0_72 = arith.constant 0 : index
    %c0_73 = arith.constant 0 : index
    %c0_74 = arith.constant 0 : index
    %155 = vector.load %arg15[%c0_72, %c0_73, %c0_74] : memref<1x8x8xf32, #tpu.memory_space<vmem>>, vector<1x8x8xf32>
    tpu.vector_store %arg15[%c0_72, %c0_73, %c0_74], %154 {strides = array<i32>} : memref<1x8x8xf32, #tpu.memory_space<vmem>>, vector<1x8x8xf32>,
    return
  }
  func.func @transform_0(%arg0: i32) -> (i32, i32, i32) {
    %c0_i32 = arith.constant 0 : i32
    %c0_i32_0 = arith.constant 0 : i32
    %c0_i32_1 = arith.constant 0 : i32
    return %arg0, %c0_i32, %c0_i32_0 : i32, i32, i32
  }
  func.func @transform_1(%arg0: i32) -> (i32, i32, i32) {
    %c0_i32 = arith.constant 0 : i32
    %c0_i32_0 = arith.constant 0 : i32
    %c0_i32_1 = arith.constant 0 : i32
    return %arg0, %c0_i32, %c0_i32_0 : i32, i32, i32
  }
  func.func @transform_2(%arg0: i32) -> (i32, i32, i32) {
    %c0_i32 = arith.constant 0 : i32
    %c0_i32_0 = arith.constant 0 : i32
    %c0_i32_1 = arith.constant 0 : i32
    return %arg0, %c0_i32, %c0_i32_0 : i32, i32, i32
  }
  func.func @transform_3(%arg0: i32) -> (i32, i32) {
    %c0_i32 = arith.constant 0 : i32
    %c0_i32_0 = arith.constant 0 : i32
    %c0_i32_1 = arith.constant 0 : i32
    return %c0_i32, %c0_i32_0 : i32, i32
  }
  func.func @transform_4(%arg0: i32) -> (i32, i32) {
    %c0_i32 = arith.constant 0 : i32
    %c0_i32_0 = arith.constant 0 : i32
    %c0_i32_1 = arith.constant 0 : i32
    return %c0_i32, %c0_i32_0 : i32, i32
  }
  func.func @transform_5(%arg0: i32) -> (i32, i32) {
    %c0_i32 = arith.constant 0 : i32
    %c0_i32_0 = arith.constant 0 : i32
    %c0_i32_1 = arith.constant 0 : i32
    return %c0_i32, %c0_i32_0 : i32, i32
  }
  func.func @transform_6(%arg0: i32) -> (i32, i32) {
    %c0_i32 = arith.constant 0 : i32
    %c0_i32_0 = arith.constant 0 : i32
    %c0_i32_1 = arith.constant 0 : i32
    return %c0_i32, %c0_i32_0 : i32, i32
  }
  func.func @transform_7(%arg0: i32) -> (i32, i32) {
    %c0_i32 = arith.constant 0 : i32
    %c0_i32_0 = arith.constant 0 : i32
    %c0_i32_1 = arith.constant 0 : i32
    return %c0_i32, %c0_i32_0 : i32, i32
  }
  func.func @transform_8(%arg0: i32) -> (i32, i32) {
    %c0_i32 = arith.constant 0 : i32
    %c0_i32_0 = arith.constant 0 : i32
    %c0_i32_1 = arith.constant 0 : i32
    return %c0_i32, %c0_i32_0 : i32, i32
  }
  func.func @transform_9(%arg0: i32) -> (i32, i32) {
    %c0_i32 = arith.constant 0 : i32
    %c0_i32_0 = arith.constant 0 : i32
    %c0_i32_1 = arith.constant 0 : i32
    return %c0_i32, %c0_i32_0 : i32, i32
  }
  func.func @transform_10(%arg0: i32) -> (i32, i32) {
    %c0_i32 = arith.constant 0 : i32
    %c0_i32_0 = arith.constant 0 : i32
    %c0_i32_1 = arith.constant 0 : i32
    return %c0_i32, %c0_i32_0 : i32, i32
  }
  func.func @transform_11(%arg0: i32) -> (i32, i32) {
    %c0_i32 = arith.constant 0 : i32
    %c0_i32_0 = arith.constant 0 : i32
    %c0_i32_1 = arith.constant 0 : i32
    return %c0_i32, %c0_i32_0 : i32, i32
  }
  func.func @transform_12(%arg0: i32) -> (i32, i32) {
    %c0_i32 = arith.constant 0 : i32
    %c0_i32_0 = arith.constant 0 : i32
    %c0_i32_1 = arith.constant 0 : i32
    return %c0_i32, %c0_i32_0 : i32, i32
  }
  func.func @transform_13(%arg0: i32) -> (i32, i32, i32) {
    %c0_i32 = arith.constant 0 : i32
    %c0_i32_0 = arith.constant 0 : i32
    %c0_i32_1 = arith.constant 0 : i32
    return %arg0, %c0_i32, %c0_i32_0 : i32, i32, i32
  }
  func.func @transform_14(%arg0: i32) -> (i32, i32, i32) {
    %c0_i32 = arith.constant 0 : i32
    %c0_i32_0 = arith.constant 0 : i32
    %c0_i32_1 = arith.constant 0 : i32
    return %arg0, %c0_i32, %c0_i32_0 : i32, i32, i32
  }
}

</mosaic_0001>

<llo_original>
// kernel: tpu_custom_call.1
$region0: #{tpu_custom_call.1}
  #allocation0 [shape = 'u32[]', space=smem, size = 0x4, offset = 0x4, fixed_abs, tag = 'smem constant byte address 0x4 - core index']
  #allocation1 [shape = 'u32[72,128]{1,0:T(1,128)}', space=vmem, size = 0x9000, scoped, tag = 'internal scratch']
  #allocation2 [shape = 'f32[1,8,32]{2,1,0:T(8,128)}', space=vmem, size = 0x1000, scoped, tag = 'scratch operand']
  %s0 = inlined_call_operand.hbm [shape: f32[2,8,32], index: 0, kind: input, shape index: {}]
  %s1 = inlined_call_operand.hbm [shape: f32[2,8,32], index: 1, kind: input, shape index: {}]
  %s2 = inlined_call_operand.hbm [shape: f32[2,8,32], index: 2, kind: input, shape index: {}]
  %s3 = inlined_call_operand.hbm [shape: f32[32,32], index: 3, kind: input, shape index: {}]
  %s4 = inlined_call_operand.hbm [shape: f32[32,32], index: 4, kind: input, shape index: {}]
  %s5 = inlined_call_operand.hbm [shape: f32[32,32], index: 5, kind: input, shape index: {}]
  %s6 = inlined_call_operand.vmem [shape: f32[1,32], index: 6, kind: input, shape index: {}]
  %s7 = inlined_call_operand.vmem [shape: f32[1,32], index: 7, kind: input, shape index: {}]
  %s8 = inlined_call_operand.vmem [shape: f32[1,32], index: 8, kind: input, shape index: {}]
  %s9 = inlined_call_operand.hbm [shape: f32[32,32], index: 9, kind: input, shape index: {}]
  %s10 = inlined_call_operand.vmem [shape: f32[1,32], index: 10, kind: input, shape index: {}]
  %s11 = inlined_call_operand.vmem [shape: f32[1,32], index: 11, kind: input, shape index: {}]
  %s12 = inlined_call_operand.vmem [shape: f32[1,32], index: 12, kind: input, shape index: {}]
  %s13 = inlined_call_operand.hbm [shape: f32[2,8,32], index: 13, kind: output, shape index: {0}]
  %s14 = inlined_call_operand.hbm [shape: f32[2,8,8], index: 14, kind: output, shape index: {1}]
  %15 = xla_tuple %s13, %s14
  %s16 = sld [smem:[#allocation0]]
  $region121: #{tpu_custom_call.1} parent=0
    _
  %s18 = ssub.s32 1, %s16
  %s19 = scalar_select 0, %s18, %s16
  $region1: #{tpu_custom_call.1} parent=0
    #allocation3 [shape = 'u8[8192]{0}', space=vmem, size = 0x2000, scoped, tag = 'input window, operand 0']
    #allocation4 [shape = 's32[2]{0}', space=sflag, size = 0x8, scoped, tag = 'scoped memory for tpu_custom_call.1']
    #allocation5 [shape = 's32[2]{0}', space=sflag, size = 0x8, scoped, tag = 'scoped memory for tpu_custom_call.1']
    #allocation6 [shape = 'u8[8192]{0}', space=vmem, size = 0x2000, scoped, tag = 'input window, operand 1']
    #allocation7 [shape = 's32[2]{0}', space=sflag, size = 0x8, scoped, tag = 'scoped memory for tpu_custom_call.1']
    #allocation8 [shape = 'u8[8192]{0}', space=vmem, size = 0x2000, scoped, tag = 'input window, operand 2']
    #allocation9 [shape = 'u8[16384]{0}', space=vmem, size = 0x4000, scoped, tag = 'input window, operand 3, single buffered']
    #allocation10 [shape = 's32[1]{0}', space=sflag, size = 0x4, scoped, tag = 'scoped memory for tpu_custom_call.1']
    #allocation11 [shape = 'u8[16384]{0}', space=vmem, size = 0x4000, scoped, tag = 'input window, operand 4, single buffered']
    #allocation12 [shape = 'u8[16384]{0}', space=vmem, size = 0x4000, scoped, tag = 'input window, operand 5, single buffered']
    #allocation13 [shape = 's32[1]{0}', space=sflag, size = 0x4, scoped, tag = 'scoped memory for tpu_custom_call.1']
    #allocation14 [shape = 'u8[16384]{0}', space=vmem, size = 0x4000, scoped, tag = 'input window, operand 9, single buffered']
    #allocation15 [shape = 'u8[8192]{0}', space=vmem, size = 0x2000, scoped, tag = 'output window, operand 0']
    #allocation16 [shape = 'u8[8192]{0}', space=vmem, size = 0x2000, scoped, tag = 'output window, operand 1']
    #allocation17 [shape = 's32[2]{0}', space=sflag, size = 0x8, scoped, tag = 'scoped memory for tpu_custom_call.1']
    %20 = vsyncpa [#allocation4], 0
    %s21 = scalar_lea.sflag [#allocation4], 1
    %22 = vsyncpa %s21, 0
    %23 = vsyncpa [#allocation7], 0
    %s24 = scalar_lea.sflag [#allocation7], 1
    %25 = vsyncpa %s24, 0
    %26 = vsyncpa [#allocation10], 0
    %27 = vsyncpa [#allocation13], 0
    %28 = vsyncpa [#allocation5], 0
    %s29 = scalar_lea.sflag [#allocation5], 1
    %30 = vsyncpa %s29, 0
    %31 = vsyncpa [#allocation17], 0
    %s32 = scalar_lea.sflag [#allocation17], 1
    %33 = vsyncpa %s32, 0
    loop: start=0, step=1, limit=4
    $region2: #{tpu_custom_call.1} parent=1 // loop_pre_header
      _
    $region3: #{tpu_custom_call.1} parent=1 // loop_header
      %s35 = sphi 0, %s39
      %p36 = scmp.ge.s32.totalorder %s35, 4
      %s45 = sphi 0, %s47
      %s48 = sphi 0, %s45
      %s49 = sphi 0, %s48
      %s65 = sphi 0, %s49
      %s71 = sphi 0, %s73
      %s74 = sphi 0, %s71
      %s75 = sphi 0, %s74
      %s91 = sphi 0, %s75
      %s97 = sphi 0, %s99
      %s100 = sphi 0, %s97
      %s101 = sphi 0, %s100
      %s117 = sphi 0, %s101
      %s121 = sphi 0, %s121
      %s123 = sphi 0, %s121
      %s124 = sphi 0, %s123
      %s138 = sphi 0, %s124
      %s142 = sphi 0, %s142
      %s144 = sphi 0, %s142
      %s145 = sphi 0, %s144
      %s159 = sphi 0, %s145
      %s163 = sphi 0, %s163
      %s165 = sphi 0, %s163
      %s166 = sphi 0, %s165
      %s180 = sphi 0, %s166
      %s184 = sphi 0, %s184
      %s186 = sphi 0, %s184
      %s187 = sphi 0, %s186
      %s201 = sphi 0, %s187
      %s205 = sphi 0, %s205
      %s207 = sphi 0, %s205
      %s208 = sphi 0, %s207
      %s222 = sphi 0, %s208
      %s226 = sphi 0, %s226
      %s228 = sphi 0, %s226
      %s229 = sphi 0, %s228
      %s243 = sphi 0, %s229
      %s247 = sphi 0, %s247
      %s249 = sphi 0, %s247
      %s250 = sphi 0, %s249
      %s264 = sphi 0, %s250
      %s268 = sphi 0, %s268
      %s270 = sphi 0, %s268
      %s271 = sphi 0, %s270
      %s285 = sphi 0, %s271
      %s289 = sphi 0, %s289
      %s291 = sphi 0, %s289
      %s292 = sphi 0, %s291
      %s306 = sphi 0, %s292
      %s310 = sphi 0, %s310
      %s312 = sphi 0, %s310
      %s313 = sphi 0, %s312
      %s327 = sphi 0, %s313
      %s333 = sphi 0, %s335
      %s336 = sphi 0, %s333
      %s337 = sphi 0, %s336
      %s353 = sphi 0, %s337
      %s359 = sphi 0, %s361
      %s362 = sphi 0, %s359
      %s363 = sphi 0, %s362
      %s379 = sphi 0, %s363
    $region4: #{tpu_custom_call.1} parent=1 // loop_header_branch
      %38 = sbr.rel (%p36) target = $region8
    $region5: #{tpu_custom_call.1} parent=1 // loop_body
      %s40 = ssub.s32 %s35, 1
      %s41 = ssub.s32 %s35, 2
      %s42 = sadd.s32 %s35, 1
      %s43 = ssub.s32 %s35, %s42
      %p44 = scmp.eq.s32.totalorder %s43, 0
      %s46 = sadd.s32 %s45, 1
      %s47 = scalar_select %p44, %s45, %s46
      %p50 = pneg %p44
      %p51 = scmp.eq.s32.totalorder %s35, 1
      %p52 = por %p50, %p51
      %p53 = scmp.ne.s32.totalorder %s45, %s48
      %p54 = scmp.eq.s32.totalorder %s35, 0
      %p55 = por %p53, %p54
      %p56 = scmp.ne.s32.totalorder %s45, %s48
      %p57 = scmp.eq.s32.totalorder %s40, 1
      %p58 = por %p56, %p57
      %p59 = scmp.ne.s32.totalorder %s48, %s49
      %p60 = scmp.eq.s32.totalorder %s40, 0
      %p61 = por %p59, %p60
      %p62 = scmp.ne.s32.totalorder %s48, %s49
      %p63 = scmp.eq.s32.totalorder %s41, 1
      %p64 = por %p62, %p63
      %p66 = scmp.ne.s32.totalorder %s49, %s65
      %p67 = scmp.eq.s32.totalorder %s41, 0
      %p68 = por %p66, %p67
      %s69 = ssub.s32 %s35, %s42
      %p70 = scmp.eq.s32.totalorder %s69, 0
      %s72 = sadd.s32 %s71, 1
      %s73 = scalar_select %p70, %s71, %s72
      %p76 = pneg %p70
      %p77 = scmp.eq.s32.totalorder %s35, 1
      %p78 = por %p76, %p77
      %p79 = scmp.ne.s32.totalorder %s71, %s74
      %p80 = scmp.eq.s32.totalorder %s35, 0
      %p81 = por %p79, %p80
      %p82 = scmp.ne.s32.totalorder %s71, %s74
      %p83 = scmp.eq.s32.totalorder %s40, 1
      %p84 = por %p82, %p83
      %p85 = scmp.ne.s32.totalorder %s74, %s75
      %p86 = scmp.eq.s32.totalorder %s40, 0
      %p87 = por %p85, %p86
      %p88 = scmp.ne.s32.totalorder %s74, %s75
      %p89 = scmp.eq.s32.totalorder %s41, 1
      %p90 = por %p88, %p89
      %p92 = scmp.ne.s32.totalorder %s75, %s91
      %p93 = scmp.eq.s32.totalorder %s41, 0
      %p94 = por %p92, %p93
      %s95 = ssub.s32 %s35, %s42
      %p96 = scmp.eq.s32.totalorder %s95, 0
      %s98 = sadd.s32 %s97, 1
      %s99 = scalar_select %p96, %s97, %s98
      %p102 = pneg %p96
      %p103 = scmp.eq.s32.totalorder %s35, 1
      %p104 = por %p102, %p103
      %p105 = scmp.ne.s32.totalorder %s97, %s100
      %p106 = scmp.eq.s32.totalorder %s35, 0
      %p107 = por %p105, %p106
      %p108 = scmp.ne.s32.totalorder %s97, %s100
      %p109 = scmp.eq.s32.totalorder %s40, 1
      %p110 = por %p108, %p109
      %p111 = scmp.ne.s32.totalorder %s100, %s101
      %p112 = scmp.eq.s32.totalorder %s40, 0
      %p113 = por %p111, %p112
      %p114 = scmp.ne.s32.totalorder %s100, %s101
      %p115 = scmp.eq.s32.totalorder %s41, 1
      %p116 = por %p114, %p115
      %p118 = scmp.ne.s32.totalorder %s101, %s117
      %p119 = scmp.eq.s32.totalorder %s41, 0
      %p120 = por %p118, %p119
      %s122 = sadd.s32 %s121, 1
      %p125 = scmp.eq.s32.totalorder %s35, 1
      %p126 = scmp.ne.s32.totalorder %s121, %s123
      %p127 = scmp.eq.s32.totalorder %s35, 0
      %p128 = por %p126, %p127
      %p129 = scmp.ne.s32.totalorder %s121, %s123
      %p130 = scmp.eq.s32.totalorder %s40, 1
      %p131 = por %p129, %p130
      %p132 = scmp.ne.s32.totalorder %s123, %s124
      %p133 = scmp.eq.s32.totalorder %s40, 0
      %p134 = por %p132, %p133
      %p135 = scmp.ne.s32.totalorder %s123, %s124
      %p136 = scmp.eq.s32.totalorder %s41, 1
      %p137 = por %p135, %p136
      %p139 = scmp.ne.s32.totalorder %s124, %s138
      %p140 = scmp.eq.s32.totalorder %s41, 0
      %p141 = por %p139, %p140
      %s143 = sadd.s32 %s142, 1
      %p146 = scmp.eq.s32.totalorder %s35, 1
      %p147 = scmp.ne.s32.totalorder %s142, %s144
      %p148 = scmp.eq.s32.totalorder %s35, 0
      %p149 = por %p147, %p148
      %p150 = scmp.ne.s32.totalorder %s142, %s144
      %p151 = scmp.eq.s32.totalorder %s40, 1
      %p152 = por %p150, %p151
      %p153 = scmp.ne.s32.totalorder %s144, %s145
      %p154 = scmp.eq.s32.totalorder %s40, 0
      %p155 = por %p153, %p154
      %p156 = scmp.ne.s32.totalorder %s144, %s145
      %p157 = scmp.eq.s32.totalorder %s41, 1
      %p158 = por %p156, %p157
      %p160 = scmp.ne.s32.totalorder %s145, %s159
      %p161 = scmp.eq.s32.totalorder %s41, 0
      %p162 = por %p160, %p161
      %s164 = sadd.s32 %s163, 1
      %p167 = scmp.eq.s32.totalorder %s35, 1
      %p168 = scmp.ne.s32.totalorder %s163, %s165
      %p169 = scmp.eq.s32.totalorder %s35, 0
      %p170 = por %p168, %p169
      %p171 = scmp.ne.s32.totalorder %s163, %s165
      %p172 = scmp.eq.s32.totalorder %s40, 1
      %p173 = por %p171, %p172
      %p174 = scmp.ne.s32.totalorder %s165, %s166
      %p175 = scmp.eq.s32.totalorder %s40, 0
      %p176 = por %p174, %p175
      %p177 = scmp.ne.s32.totalorder %s165, %s166
      %p178 = scmp.eq.s32.totalorder %s41, 1
      %p179 = por %p177, %p178
      %p181 = scmp.ne.s32.totalorder %s166, %s180
      %p182 = scmp.eq.s32.totalorder %s41, 0
      %p183 = por %p181, %p182
      %s185 = sadd.s32 %s184, 1
      %p188 = scmp.eq.s32.totalorder %s35, 1
      %p189 = scmp.ne.s32.totalorder %s184, %s186
      %p190 = scmp.eq.s32.totalorder %s35, 0
      %p191 = por %p189, %p190
      %p192 = scmp.ne.s32.totalorder %s184, %s186
      %p193 = scmp.eq.s32.totalorder %s40, 1
      %p194 = por %p192, %p193
      %p195 = scmp.ne.s32.totalorder %s186, %s187
      %p196 = scmp.eq.s32.totalorder %s40, 0
      %p197 = por %p195, %p196
      %p198 = scmp.ne.s32.totalorder %s186, %s187
      %p199 = scmp.eq.s32.totalorder %s41, 1
      %p200 = por %p198, %p199
      %p202 = scmp.ne.s32.totalorder %s187, %s201
      %p203 = scmp.eq.s32.totalorder %s41, 0
      %p204 = por %p202, %p203
      %s206 = sadd.s32 %s205, 1
      %p209 = scmp.eq.s32.totalorder %s35, 1
      %p210 = scmp.ne.s32.totalorder %s205, %s207
      %p211 = scmp.eq.s32.totalorder %s35, 0
      %p212 = por %p210, %p211
      %p213 = scmp.ne.s32.totalorder %s205, %s207
      %p214 = scmp.eq.s32.totalorder %s40, 1
      %p215 = por %p213, %p214
      %p216 = scmp.ne.s32.totalorder %s207, %s208
      %p217 = scmp.eq.s32.totalorder %s40, 0
      %p218 = por %p216, %p217
      %p219 = scmp.ne.s32.totalorder %s207, %s208
      %p220 = scmp.eq.s32.totalorder %s41, 1
      %p221 = por %p219, %p220
      %p223 = scmp.ne.s32.totalorder %s208, %s222
      %p224 = scmp.eq.s32.totalorder %s41, 0
      %p225 = por %p223, %p224
      %s227 = sadd.s32 %s226, 1
      %p230 = scmp.eq.s32.totalorder %s35, 1
      %p231 = scmp.ne.s32.totalorder %s226, %s228
      %p232 = scmp.eq.s32.totalorder %s35, 0
      %p233 = por %p231, %p232
      %p234 = scmp.ne.s32.totalorder %s226, %s228
      %p235 = scmp.eq.s32.totalorder %s40, 1
      %p236 = por %p234, %p235
      %p237 = scmp.ne.s32.totalorder %s228, %s229
      %p238 = scmp.eq.s32.totalorder %s40, 0
      %p239 = por %p237, %p238
      %p240 = scmp.ne.s32.totalorder %s228, %s229
      %p241 = scmp.eq.s32.totalorder %s41, 1
      %p242 = por %p240, %p241
      %p244 = scmp.ne.s32.totalorder %s229, %s243
      %p245 = scmp.eq.s32.totalorder %s41, 0
      %p246 = por %p244, %p245
      %s248 = sadd.s32 %s247, 1
      %p251 = scmp.eq.s32.totalorder %s35, 1
      %p252 = scmp.ne.s32.totalorder %s247, %s249
      %p253 = scmp.eq.s32.totalorder %s35, 0
      %p254 = por %p252, %p253
      %p255 = scmp.ne.s32.totalorder %s247, %s249
      %p256 = scmp.eq.s32.totalorder %s40, 1
      %p257 = por %p255, %p256
      %p258 = scmp.ne.s32.totalorder %s249, %s250
      %p259 = scmp.eq.s32.totalorder %s40, 0
      %p260 = por %p258, %p259
      %p261 = scmp.ne.s32.totalorder %s249, %s250
      %p262 = scmp.eq.s32.totalorder %s41, 1
      %p263 = por %p261, %p262
      %p265 = scmp.ne.s32.totalorder %s250, %s264
      %p266 = scmp.eq.s32.totalorder %s41, 0
      %p267 = por %p265, %p266
      %s269 = sadd.s32 %s268, 1
      %p272 = scmp.eq.s32.totalorder %s35, 1
      %p273 = scmp.ne.s32.totalorder %s268, %s270
      %p274 = scmp.eq.s32.totalorder %s35, 0
      %p275 = por %p273, %p274
      %p276 = scmp.ne.s32.totalorder %s268, %s270
      %p277 = scmp.eq.s32.totalorder %s40, 1
      %p278 = por %p276, %p277
      %p279 = scmp.ne.s32.totalorder %s270, %s271
      %p280 = scmp.eq.s32.totalorder %s40, 0
      %p281 = por %p279, %p280
      %p282 = scmp.ne.s32.totalorder %s270, %s271
      %p283 = scmp.eq.s32.totalorder %s41, 1
      %p284 = por %p282, %p283
      %p286 = scmp.ne.s32.totalorder %s271, %s285
      %p287 = scmp.eq.s32.totalorder %s41, 0
      %p288 = por %p286, %p287
      %s290 = sadd.s32 %s289, 1
      %p293 = scmp.eq.s32.totalorder %s35, 1
      %p294 = scmp.ne.s32.totalorder %s289, %s291
      %p295 = scmp.eq.s32.totalorder %s35, 0
      %p296 = por %p294, %p295
      %p297 = scmp.ne.s32.totalorder %s289, %s291
      %p298 = scmp.eq.s32.totalorder %s40, 1
      %p299 = por %p297, %p298
      %p300 = scmp.ne.s32.totalorder %s291, %s292
      %p301 = scmp.eq.s32.totalorder %s40, 0
      %p302 = por %p300, %p301
      %p303 = scmp.ne.s32.totalorder %s291, %s292
      %p304 = scmp.eq.s32.totalorder %s41, 1
      %p305 = por %p303, %p304
      %p307 = scmp.ne.s32.totalorder %s292, %s306
      %p308 = scmp.eq.s32.totalorder %s41, 0
      %p309 = por %p307, %p308
      %s311 = sadd.s32 %s310, 1
      %p314 = scmp.eq.s32.totalorder %s35, 1
      %p315 = scmp.ne.s32.totalorder %s310, %s312
      %p316 = scmp.eq.s32.totalorder %s35, 0
      %p317 = por %p315, %p316
      %p318 = scmp.ne.s32.totalorder %s310, %s312
      %p319 = scmp.eq.s32.totalorder %s40, 1
      %p320 = por %p318, %p319
      %p321 = scmp.ne.s32.totalorder %s312, %s313
      %p322 = scmp.eq.s32.totalorder %s40, 0
      %p323 = por %p321, %p322
      %p324 = scmp.ne.s32.totalorder %s312, %s313
      %p325 = scmp.eq.s32.totalorder %s41, 1
      %p326 = por %p324, %p325
      %p328 = scmp.ne.s32.totalorder %s313, %s327
      %p329 = scmp.eq.s32.totalorder %s41, 0
      %p330 = por %p328, %p329
      %s331 = ssub.s32 %s35, %s42
      %p332 = scmp.eq.s32.totalorder %s331, 0
      %s334 = sadd.s32 %s333, 1
      %s335 = scalar_select %p332, %s333, %s334
      %p338 = pneg %p332
      %p339 = scmp.eq.s32.totalorder %s35, 1
      %p340 = por %p338, %p339
      %p341 = scmp.ne.s32.totalorder %s333, %s336
      %p342 = scmp.eq.s32.totalorder %s35, 0
      %p343 = por %p341, %p342
      %p344 = scmp.ne.s32.totalorder %s333, %s336
      %p345 = scmp.eq.s32.totalorder %s40, 1
      %p346 = por %p344, %p345
      %p347 = scmp.ne.s32.totalorder %s336, %s337
      %p348 = scmp.eq.s32.totalorder %s40, 0
      %p349 = por %p347, %p348
      %p350 = scmp.ne.s32.totalorder %s336, %s337
      %p351 = scmp.eq.s32.totalorder %s41, 1
      %p352 = por %p350, %p351
      %p354 = scmp.ne.s32.totalorder %s337, %s353
      %p355 = scmp.eq.s32.totalorder %s41, 0
      %p356 = por %p354, %p355
      %s357 = ssub.s32 %s35, %s42
      %p358 = scmp.eq.s32.totalorder %s357, 0
      %s360 = sadd.s32 %s359, 1
      %s361 = scalar_select %p358, %s359, %s360
      %p364 = pneg %p358
      %p365 = scmp.eq.s32.totalorder %s35, 1
      %p366 = por %p364, %p365
      %p367 = scmp.ne.s32.totalorder %s359, %s362
      %p368 = scmp.eq.s32.totalorder %s35, 0
      %p369 = por %p367, %p368
      %p370 = scmp.ne.s32.totalorder %s359, %s362
      %p371 = scmp.eq.s32.totalorder %s40, 1
      %p372 = por %p370, %p371
      %p373 = scmp.ne.s32.totalorder %s362, %s363
      %p374 = scmp.eq.s32.totalorder %s40, 0
      %p375 = por %p373, %p374
      %p376 = scmp.ne.s32.totalorder %s362, %s363
      %p377 = scmp.eq.s32.totalorder %s41, 1
      %p378 = por %p376, %p377
      %p380 = scmp.ne.s32.totalorder %s363, %s379
      %p381 = scmp.eq.s32.totalorder %s41, 0
      %p382 = por %p380, %p381
      %p383 = scmp.le.s32.totalorder 1, %s35
      %p384 = scmp.lt.s32.totalorder %s35, 3
      %p385 = pnand %p383, %p384
      %p386 = pneg %p385
      // Predicated region
      $region9: #{tpu_custom_call.1} parent=5 // pred_check
        _
      $region10: #{tpu_custom_call.1} parent=5 // pred_check_branch
        %388 = sbr.rel (%p385) target = $region12
      $region11: #{tpu_custom_call.1} parent=5 // pred_region
        %s389 = ssub.s32 %s35, 1
        // Predicated region
        $region13: #{tpu_custom_call.1} parent=11 // pred_check
          %p390 = pneg %p134
        $region14: #{tpu_custom_call.1} parent=11 // pred_check_branch
          %392 = sbr.rel (%p390) target = $region16
        $region15: #{tpu_custom_call.1} parent=11 // pred_region
          %394 = vsyncadd [#allocation10], 0
          %s395 = sshll.u32 %s3, 4
          %s396 = int_to_ptr.hbm [resolvable:$true] %s395
          %s397 = sshll.u32 [#allocation9], 4
          %s398 = int_to_ptr.vmem [resolvable:$true] %s397
          %403 = dma.hbm_to_vmem [thread:$0]  %s396, 512, %s398, [#allocation10], 128, 128, 8
        $region16: #{tpu_custom_call.1} parent=11 // pred_fallthru
          _
        // Predicated region
        $region17: #{tpu_custom_call.1} parent=11 // pred_check
          %p404 = pneg %p155
        $region18: #{tpu_custom_call.1} parent=11 // pred_check_branch
          %406 = sbr.rel (%p404) target = $region20
        $region19: #{tpu_custom_call.1} parent=11 // pred_region
          %408 = vsyncadd [#allocation10], 0
          %s409 = sshll.u32 %s4, 4
          %s410 = int_to_ptr.hbm [resolvable:$true] %s409
          %s411 = sshll.u32 [#allocation11], 4
          %s412 = int_to_ptr.vmem [resolvable:$true] %s411
          %417 = dma.hbm_to_vmem [thread:$0]  %s410, 512, %s412, [#allocation10], 128, 128, 8
        $region20: #{tpu_custom_call.1} parent=11 // pred_fallthru
          _
        // Predicated region
        $region21: #{tpu_custom_call.1} parent=11 // pred_check
          %p418 = pneg %p176
        $region22: #{tpu_custom_call.1} parent=11 // pred_check_branch
          %420 = sbr.rel (%p418) target = $region24
        $region23: #{tpu_custom_call.1} parent=11 // pred_region
          %422 = vsyncadd [#allocation13], 0
          %s423 = sshll.u32 %s5, 4
          %s424 = int_to_ptr.hbm [resolvable:$true] %s423
          %s425 = sshll.u32 [#allocation12], 4
          %s426 = int_to_ptr.vmem [resolvable:$true] %s425
          %431 = dma.hbm_to_vmem [thread:$0]  %s424, 512, %s426, [#allocation13], 128, 128, 8
        $region24: #{tpu_custom_call.1} parent=11 // pred_fallthru
          _
        // Predicated region
        $region25: #{tpu_custom_call.1} parent=11 // pred_check
          %p432 = pneg %p197
        $region26: #{tpu_custom_call.1} parent=11 // pred_check_branch
          %434 = sbr.rel (%p432) target = $region28
        $region27: #{tpu_custom_call.1} parent=11 // pred_region
          _
        $region28: #{tpu_custom_call.1} parent=11 // pred_fallthru
          _
        // Predicated region
        $region29: #{tpu_custom_call.1} parent=11 // pred_check
          %p435 = pneg %p218
        $region30: #{tpu_custom_call.1} parent=11 // pred_check_branch
          %437 = sbr.rel (%p435) target = $region32
        $region31: #{tpu_custom_call.1} parent=11 // pred_region
          _
        $region32: #{tpu_custom_call.1} parent=11 // pred_fallthru
          _
        // Predicated region
        $region33: #{tpu_custom_call.1} parent=11 // pred_check
          %p438 = pneg %p239
        $region34: #{tpu_custom_call.1} parent=11 // pred_check_branch
          %440 = sbr.rel (%p438) target = $region36
        $region35: #{tpu_custom_call.1} parent=11 // pred_region
          _
        $region36: #{tpu_custom_call.1} parent=11 // pred_fallthru
          _
        // Predicated region
        $region37: #{tpu_custom_call.1} parent=11 // pred_check
          %p441 = pneg %p260
        $region38: #{tpu_custom_call.1} parent=11 // pred_check_branch
          %443 = sbr.rel (%p441) target = $region40
        $region39: #{tpu_custom_call.1} parent=11 // pred_region
          %445 = vsyncadd [#allocation13], 0
          %s446 = sshll.u32 %s9, 4
          %s447 = int_to_ptr.hbm [resolvable:$true] %s446
          %s448 = sshll.u32 [#allocation14], 4
          %s449 = int_to_ptr.vmem [resolvable:$true] %s448
          %454 = dma.hbm_to_vmem [thread:$0]  %s447, 512, %s449, [#allocation13], 128, 128, 8
        $region40: #{tpu_custom_call.1} parent=11 // pred_fallthru
          _
        // Predicated region
        $region41: #{tpu_custom_call.1} parent=11 // pred_check
          %p455 = pneg %p281
        $region42: #{tpu_custom_call.1} parent=11 // pred_check_branch
          %457 = sbr.rel (%p455) target = $region44
        $region43: #{tpu_custom_call.1} parent=11 // pred_region
          _
        $region44: #{tpu_custom_call.1} parent=11 // pred_fallthru
          _
        // Predicated region
        $region45: #{tpu_custom_call.1} parent=11 // pred_check
          %p458 = pneg %p302
        $region46: #{tpu_custom_call.1} parent=11 // pred_check_branch
          %460 = sbr.rel (%p458) target = $region48
        $region47: #{tpu_custom_call.1} parent=11 // pred_region
          _
        $region48: #{tpu_custom_call.1} parent=11 // pred_fallthru
          _
        // Predicated region
        $region49: #{tpu_custom_call.1} parent=11 // pred_check
          %p461 = pneg %p323
        $region50: #{tpu_custom_call.1} parent=11 // pred_check_branch
          %463 = sbr.rel (%p461) target = $region52
        $region51: #{tpu_custom_call.1} parent=11 // pred_region
          _
        $region52: #{tpu_custom_call.1} parent=11 // pred_fallthru
          _
      $region12: #{tpu_custom_call.1} parent=5 // pred_fallthru
        _
      %p464 = scmp.lt.s32.totalorder %s35, 2
      // Predicated region
      $region53: #{tpu_custom_call.1} parent=5 // pred_check
        %p465 = pneg %p464
      $region54: #{tpu_custom_call.1} parent=5 // pred_check_branch
        %467 = sbr.rel (%p465) target = $region56
      $region55: #{tpu_custom_call.1} parent=5 // pred_region
        // Predicated region
        $region57: #{tpu_custom_call.1} parent=55 // pred_check
          %p468 = pneg %p55
        $region58: #{tpu_custom_call.1} parent=55 // pred_check_branch
          %470 = sbr.rel (%p468) target = $region60
        $region59: #{tpu_custom_call.1} parent=55 // pred_region
          %s471 = sand.u32 %s45, 1
          %s472 = scalar_lea.sflag [#allocation4], %s471
          %s473 = sand.u32 %s45, 1
          %s474 = smul.addr %s473, 8
          %s475 = scalar_lea.vmem [#allocation3], %s474
          %477 = vsyncadd %s472, 0
          %s478 = smul.addr %s35, 8
          %s479 = scalar_lea.hbm %s0, %s478
          %s481 = sshll.u32 %s479, 4
          %s482 = int_to_ptr.hbm [resolvable:$true] %s481
          %s483 = sshll.u32 %s475, 4
          %s484 = int_to_ptr.vmem [resolvable:$true] %s483
          %486 = dma.hbm_to_vmem [thread:$0]  %s482, 128, %s484, %s472
        $region60: #{tpu_custom_call.1} parent=55 // pred_fallthru
          _
        // Predicated region
        $region61: #{tpu_custom_call.1} parent=55 // pred_check
          %p487 = pneg %p81
        $region62: #{tpu_custom_call.1} parent=55 // pred_check_branch
          %489 = sbr.rel (%p487) target = $region64
        $region63: #{tpu_custom_call.1} parent=55 // pred_region
          %s490 = sand.u32 %s35, 1
          %s491 = scalar_lea.sflag [#allocation7], %s490
          %s492 = sand.u32 %s71, 1
          %s493 = smul.addr %s492, 8
          %s494 = scalar_lea.vmem [#allocation6], %s493
          %496 = vsyncadd %s491, 0
          %s497 = smul.addr %s35, 8
          %s498 = scalar_lea.hbm %s1, %s497
          %s500 = sshll.u32 %s498, 4
          %s501 = int_to_ptr.hbm [resolvable:$true] %s500
          %s502 = sshll.u32 %s494, 4
          %s503 = int_to_ptr.vmem [resolvable:$true] %s502
          %505 = dma.hbm_to_vmem [thread:$0]  %s501, 128, %s503, %s491
        $region64: #{tpu_custom_call.1} parent=55 // pred_fallthru
          _
        // Predicated region
        $region65: #{tpu_custom_call.1} parent=55 // pred_check
          %p506 = pneg %p107
        $region66: #{tpu_custom_call.1} parent=55 // pred_check_branch
          %508 = sbr.rel (%p506) target = $region68
        $region67: #{tpu_custom_call.1} parent=55 // pred_region
          %s509 = sand.u32 %s35, 1
          %s510 = scalar_lea.sflag [#allocation7], %s509
          %s511 = sand.u32 %s97, 1
          %s512 = smul.addr %s511, 8
          %s513 = scalar_lea.vmem [#allocation8], %s512
          %515 = vsyncadd %s510, 0
          %s516 = smul.addr %s35, 8
          %s517 = scalar_lea.hbm %s2, %s516
          %s519 = sshll.u32 %s517, 4
          %s520 = int_to_ptr.hbm [resolvable:$true] %s519
          %s521 = sshll.u32 %s513, 4
          %s522 = int_to_ptr.vmem [resolvable:$true] %s521
          %524 = dma.hbm_to_vmem [thread:$0]  %s520, 128, %s522, %s510
        $region68: #{tpu_custom_call.1} parent=55 // pred_fallthru
          _
      $region56: #{tpu_custom_call.1} parent=5 // pred_fallthru
        _
      %p525 = scmp.le.s32.totalorder 1, %s35
      %p526 = scmp.lt.s32.totalorder %s35, 3
      %p527 = pnand %p525, %p526
      %p528 = pneg %p527
      // Predicated region
      $region69: #{tpu_custom_call.1} parent=5 // pred_check
        _
      $region70: #{tpu_custom_call.1} parent=5 // pred_check_branch
        %530 = sbr.rel (%p527) target = $region72
      $region71: #{tpu_custom_call.1} parent=5 // pred_region
        %s531 = ssub.s32 %s35, 1
        %s532 = sand.u32 %s48, 1
        %s533 = scalar_lea.sflag [#allocation4], %s532
        %s534 = sand.u32 %s48, 1
        %s535 = smul.addr %s534, 8
        %s536 = scalar_lea.vmem [#allocation3], %s535
        // Predicated region
        $region73: #{tpu_custom_call.1} parent=71 // pred_check
          %p537 = pneg %p61
        $region74: #{tpu_custom_call.1} parent=71 // pred_check_branch
          %539 = sbr.rel (%p537) target = $region76
        $region75: #{tpu_custom_call.1} parent=71 // pred_region
          %541 = dma.done %s533, 128
        $region76: #{tpu_custom_call.1} parent=71 // pred_fallthru
          _
        %s542 = sand.u32 %s40, 1
        %s543 = scalar_lea.sflag [#allocation7], %s542
        %s544 = sand.u32 %s74, 1
        %s545 = smul.addr %s544, 8
        %s546 = scalar_lea.vmem [#allocation6], %s545
        // Predicated region
        $region77: #{tpu_custom_call.1} parent=71 // pred_check
          %p547 = pneg %p87
        $region78: #{tpu_custom_call.1} parent=71 // pred_check_branch
          %549 = sbr.rel (%p547) target = $region80
        $region79: #{tpu_custom_call.1} parent=71 // pred_region
          %551 = dma.done %s543, 128
        $region80: #{tpu_custom_call.1} parent=71 // pred_fallthru
          _
        %s552 = sand.u32 %s40, 1
        %s553 = scalar_lea.sflag [#allocation7], %s552
        %s554 = sand.u32 %s100, 1
        %s555 = smul.addr %s554, 8
        %s556 = scalar_lea.vmem [#allocation8], %s555
        // Predicated region
        $region81: #{tpu_custom_call.1} parent=71 // pred_check
          %p557 = pneg %p113
        $region82: #{tpu_custom_call.1} parent=71 // pred_check_branch
          %559 = sbr.rel (%p557) target = $region84
        $region83: #{tpu_custom_call.1} parent=71 // pred_region
          %561 = dma.done %s553, 128
        $region84: #{tpu_custom_call.1} parent=71 // pred_fallthru
          _
        // Predicated region
        $region85: #{tpu_custom_call.1} parent=71 // pred_check
          %p562 = pneg %p134
        $region86: #{tpu_custom_call.1} parent=71 // pred_check_branch
          %564 = sbr.rel (%p562) target = $region88
        $region87: #{tpu_custom_call.1} parent=71 // pred_region
          %566 = dma.done [#allocation10], 512
        $region88: #{tpu_custom_call.1} parent=71 // pred_fallthru
          _
        // Predicated region
        $region89: #{tpu_custom_call.1} parent=71 // pred_check
          %p567 = pneg %p155
        $region90: #{tpu_custom_call.1} parent=71 // pred_check_branch
          %569 = sbr.rel (%p567) target = $region92
        $region91: #{tpu_custom_call.1} parent=71 // pred_region
          %571 = dma.done [#allocation10], 512
        $region92: #{tpu_custom_call.1} parent=71 // pred_fallthru
          _
        // Predicated region
        $region93: #{tpu_custom_call.1} parent=71 // pred_check
          %p572 = pneg %p176
        $region94: #{tpu_custom_call.1} parent=71 // pred_check_branch
          %574 = sbr.rel (%p572) target = $region96
        $region95: #{tpu_custom_call.1} parent=71 // pred_region
          %576 = dma.done [#allocation13], 512
        $region96: #{tpu_custom_call.1} parent=71 // pred_fallthru
          _
        // Predicated region
        $region97: #{tpu_custom_call.1} parent=71 // pred_check
          %p577 = pneg %p260
        $region98: #{tpu_custom_call.1} parent=71 // pred_check_branch
          %579 = sbr.rel (%p577) target = $region100
        $region99: #{tpu_custom_call.1} parent=71 // pred_region
          %581 = dma.done [#allocation13], 512
        $region100: #{tpu_custom_call.1} parent=71 // pred_fallthru
          _
        %s582 = sand.u32 %s48, 1
        %s583 = scalar_lea.sflag [#allocation4], %s582
        %s584 = sand.u32 %s48, 1
        %s585 = smul.addr %s584, 8
        %s586 = scalar_lea.vmem [#allocation3], %s585
        %p587 = pneg %p61
        %p588 = pneg %p58
        %s589 = sand.u32 %s40, 1
        %s590 = scalar_lea.sflag [#allocation7], %s589
        %s591 = sand.u32 %s74, 1
        %s592 = smul.addr %s591, 8
        %s593 = scalar_lea.vmem [#allocation6], %s592
        %p594 = pneg %p87
        %p595 = pneg %p84
        %s596 = sand.u32 %s40, 1
        %s597 = scalar_lea.sflag [#allocation7], %s596
        %s598 = sand.u32 %s100, 1
        %s599 = smul.addr %s598, 8
        %s600 = scalar_lea.vmem [#allocation8], %s599
        %p601 = pneg %p113
        %p602 = pneg %p110
        %p603 = pneg %p134
        %p604 = pneg %p131
        %p605 = pneg %p155
        %p606 = pneg %p152
        %p607 = pneg %p176
        %p608 = pneg %p173
        %p609 = pneg %p197
        %p610 = pneg %p194
        %p611 = pneg %p218
        %p612 = pneg %p215
        %p613 = pneg %p239
        %p614 = pneg %p236
        %p615 = pneg %p260
        %p616 = pneg %p257
        %p617 = pneg %p281
        %p618 = pneg %p278
        %p619 = pneg %p302
        %p620 = pneg %p299
        %p621 = pneg %p323
        %p622 = pneg %p320
        %p623 = pneg %p349
        %p624 = pneg %p346
        %s625 = sand.u32 %s336, 1
        %s626 = scalar_lea.sflag [#allocation5], %s625
        %s627 = sand.u32 %s336, 1
        %s628 = smul.addr %s627, 8
        %s629 = scalar_lea.vmem [#allocation15], %s628
        %p630 = pneg %p375
        %p631 = pneg %p372
        %s632 = sand.u32 %s362, 1
        %s633 = scalar_lea.sflag [#allocation17], %s632
        %s634 = sand.u32 %s362, 1
        %s635 = smul.addr %s634, 8
        %s636 = scalar_lea.vmem [#allocation16], %s635
        %v637 = vld [vmem:[%s536] sm:$0xff]
        %v638 = vld [vmem:[%s546] sm:$0xff]
        %v639 = vld [vmem:[%s556] sm:$0xff]
        %v640 = vld [vmem:[#allocation9] sm:$0xff]
        %v641 = vld [vmem:[#allocation9 + $0x8] sm:$0xff]
        %v642 = vld [vmem:[#allocation9 + $0x10] sm:$0xff]
        %v643 = vld [vmem:[#allocation9 + $0x18] sm:$0xff]
        %v644 = vld [vmem:[%s6] sm:$0x1]
        %v646 = vperm.slane %v644, 0
        %vm648 = vcmask 261120
        %v650 = vsel %vm648, %v637, 0
        %652 = vmatpush.msra.mxu0 0.0
        %653 = vmatpush.msra.mxu0 0.0
        %654 = vmatpush.msra.mxu0 0.0
        %655 = vmatpush.msra.mxu0 0.0
        %656 = vmatpush.msra.mxu0 0.0
        %657 = vmatpush.msra.mxu0 0.0
        %658 = vmatpush.msra.mxu0 0.0
        %659 = vmatpush.msra.mxu0 0.0
        %660 = vmatpush.msra.mxu0 0.0
        %661 = vmatpush.msra.mxu0 0.0
        %662 = vmatpush.msra.mxu0 0.0
        %663 = vmatpush.msra.mxu0 0.0
        %664 = vmatpush.msra.mxu0 %v643
        %665 = vmatpush.msra.mxu0 %v642
        %666 = vmatpush.msra.mxu0 %v641
        %667 = vmatpush.msra.mxu0 %v640
        %668 = vmatmul.f32.gmra.mxu0 %v650
        %v669 = vpop.f32.mrf.mxu0
        %v670 = vadd.f32 %v646, %v669
        %671 = vdwg.mxu0
        %v672 = vld [vmem:[#allocation11] sm:$0xff]
        %v673 = vld [vmem:[#allocation11 + $0x8] sm:$0xff]
        %v674 = vld [vmem:[#allocation11 + $0x10] sm:$0xff]
        %v675 = vld [vmem:[#allocation11 + $0x18] sm:$0xff]
        %v676 = vld [vmem:[%s7] sm:$0x1]
        %v678 = vperm.slane %v676, 0
        %v681 = vsel %vm648, %v638, 0
        %683 = vmatpush.msra.mxu0 0.0
        %684 = vmatpush.msra.mxu0 0.0
        %685 = vmatpush.msra.mxu0 0.0
        %686 = vmatpush.msra.mxu0 0.0
        %687 = vmatpush.msra.mxu0 0.0
        %688 = vmatpush.msra.mxu0 0.0
        %689 = vmatpush.msra.mxu0 0.0
        %690 = vmatpush.msra.mxu0 0.0
        %691 = vmatpush.msra.mxu0 0.0
        %692 = vmatpush.msra.mxu0 0.0
        %693 = vmatpush.msra.mxu0 0.0
        %694 = vmatpush.msra.mxu0 0.0
        %695 = vmatpush.msra.mxu0 %v675
        %696 = vmatpush.msra.mxu0 %v674
        %697 = vmatpush.msra.mxu0 %v673
        %698 = vmatpush.msra.mxu0 %v672
        %699 = vmatmul.f32.gmra.mxu0 %v681
        %v700 = vpop.f32.mrf.mxu0
        %v701 = vadd.f32 %v678, %v700
        %702 = vdwg.mxu0
        %v703 = vld [vmem:[#allocation12] sm:$0xff]
        %v704 = vld [vmem:[#allocation12 + $0x8] sm:$0xff]
        %v705 = vld [vmem:[#allocation12 + $0x10] sm:$0xff]
        %v706 = vld [vmem:[#allocation12 + $0x18] sm:$0xff]
        %v707 = vld [vmem:[%s8] sm:$0x1]
        %v709 = vperm.slane %v707, 0
        %v712 = vsel %vm648, %v639, 0
        %714 = vmatpush.msra.mxu0 0.0
        %715 = vmatpush.msra.mxu0 0.0
        %716 = vmatpush.msra.mxu0 0.0
        %717 = vmatpush.msra.mxu0 0.0
        %718 = vmatpush.msra.mxu0 0.0
        %719 = vmatpush.msra.mxu0 0.0
        %720 = vmatpush.msra.mxu0 0.0
        %721 = vmatpush.msra.mxu0 0.0
        %722 = vmatpush.msra.mxu0 0.0
        %723 = vmatpush.msra.mxu0 0.0
        %724 = vmatpush.msra.mxu0 0.0
        %725 = vmatpush.msra.mxu0 0.0
        %726 = vmatpush.msra.mxu0 %v706
        %727 = vmatpush.msra.mxu0 %v705
        %728 = vmatpush.msra.mxu0 %v704
        %729 = vmatpush.msra.mxu0 %v703
        %730 = vmatmul.f32.gmra.mxu0 %v712
        %v731 = vpop.f32.mrf.mxu0
        %v732 = vadd.f32 %v709, %v731
        %733 = vdwg.mxu0
        %vm734 = vcmask 64512
        %v736 = vsel %vm734, %v670, 0
        %v739 = vsel %vm734, %v701, 0
        %741 = vmatpush.xpose.msra.mxu0 0.0
        %742 = vmatpush.xpose.msra.mxu0 0.0
        %743 = vmatpush.xpose.msra.mxu0 0.0
        %744 = vmatpush.xpose.msra.mxu0 0.0
        %745 = vmatpush.xpose.msra.mxu0 0.0
        %746 = vmatpush.xpose.msra.mxu0 0.0
        %747 = vmatpush.xpose.msra.mxu0 0.0
        %748 = vmatpush.xpose.msra.mxu0 0.0
        %749 = vmatpush.xpose.msra.mxu0 0.0
        %750 = vmatpush.xpose.msra.mxu0 0.0
        %751 = vmatpush.xpose.msra.mxu0 0.0
        %752 = vmatpush.xpose.msra.mxu0 0.0
        %753 = vmatpush.xpose.msra.mxu0 0.0
        %754 = vmatpush.xpose.msra.mxu0 0.0
        %755 = vmatpush.xpose.msra.mxu0 0.0
        %756 = vmatpush.xpose.msra.mxu0 %v739
        %757 = vmatmul.f32.gmra.mxu0 %v736
        %v758 = vpop.f32.mrf.mxu0
        %v759 = vadd.f32 0.0, %v758
        %760 = vdwg.mxu0
        %v761 = vsel %vm734, %v759, -inf
        %762 = vmax.xlane.f32.xlu0 %v761
        %v763 = vpop.xlane.xlu0 %762
        %v764 = vsub.f32 %v759, %v763
        %v765 = vmul.f32 %v764, 1.442695
        %v766 = vpow.pop %v765
        %v767 = vsel %vm734, %v766, 0.0
        %768 = vadd.xlane.f32.xlu0 %v767
        %v769 = vpop.xlane.xlu0 %768
        %v770 = vrcp.pop %v769
        %v771 = vmul.f32 %v769, %v770
        %v772 = vsub.f32 2.0, %v771
        %v773 = vmul.f32 %v770, %v772
        %v774 = vmul.f32 %v766, %v773
        %v776 = vsel %vm734, %v774, 0
        %778 = vmatpush.msra.mxu0 0.0
        %779 = vmatpush.msra.mxu0 0.0
        %780 = vmatpush.msra.mxu0 0.0
        %781 = vmatpush.msra.mxu0 0.0
        %782 = vmatpush.msra.mxu0 0.0
        %783 = vmatpush.msra.mxu0 0.0
        %784 = vmatpush.msra.mxu0 0.0
        %785 = vmatpush.msra.mxu0 0.0
        %786 = vmatpush.msra.mxu0 0.0
        %787 = vmatpush.msra.mxu0 0.0
        %788 = vmatpush.msra.mxu0 0.0
        %789 = vmatpush.msra.mxu0 0.0
        %790 = vmatpush.msra.mxu0 0.0
        %791 = vmatpush.msra.mxu0 0.0
        %792 = vmatpush.msra.mxu0 0.0
        %793 = vmatpush.msra.mxu0 %v732
        %794 = vmatmul.f32.gmra.mxu0 %v776
        %v795 = vpop.f32.mrf.mxu0
        %v796 = vadd.f32 0.0, %v795
        %797 = vdwg.mxu0
        %798 = vst.msk [vmem:[#allocation2] sm:$0xff] %vm734, %v796
        %799 = vrot.lane.b32.xlu0 %v670, 120
        %v800 = vpop.permute.xlu0 %799
        %801 = vrot.lane.b32.xlu0 %v701, 120
        %v802 = vpop.permute.xlu0 %801
        %v803 = vsel %vm734, %v800, 0
        %v805 = vsel %vm734, %v802, 0
        %807 = vmatpush.xpose.msra.mxu0 0.0
        %808 = vmatpush.xpose.msra.mxu0 0.0
        %809 = vmatpush.xpose.msra.mxu0 0.0
        %810 = vmatpush.xpose.msra.mxu0 0.0
        %811 = vmatpush.xpose.msra.mxu0 0.0
        %812 = vmatpush.xpose.msra.mxu0 0.0
        %813 = vmatpush.xpose.msra.mxu0 0.0
        %814 = vmatpush.xpose.msra.mxu0 0.0
        %815 = vmatpush.xpose.msra.mxu0 0.0
        %816 = vmatpush.xpose.msra.mxu0 0.0
        %817 = vmatpush.xpose.msra.mxu0 0.0
        %818 = vmatpush.xpose.msra.mxu0 0.0
        %819 = vmatpush.xpose.msra.mxu0 0.0
        %820 = vmatpush.xpose.msra.mxu0 0.0
        %821 = vmatpush.xpose.msra.mxu0 0.0
        %822 = vmatpush.xpose.msra.mxu0 %v805
        %823 = vmatmul.f32.gmra.mxu0 %v803
        %v824 = vpop.f32.mrf.mxu0
        %v825 = vadd.f32 0.0, %v824
        %826 = vdwg.mxu0
        %v827 = vsel %vm734, %v825, -inf
        %828 = vmax.xlane.f32.xlu0 %v827
        %v829 = vpop.xlane.xlu0 %828
        %v830 = vsub.f32 %v825, %v829
        %v831 = vmul.f32 %v830, 1.442695
        %v832 = vpow.pop %v831
        %v833 = vsel %vm734, %v832, 0.0
        %834 = vadd.xlane.f32.xlu0 %v833
        %v835 = vpop.xlane.xlu0 %834
        %v836 = vrcp.pop %v835
        %v837 = vmul.f32 %v835, %v836
        %v838 = vsub.f32 2.0, %v837
        %v839 = vmul.f32 %v836, %v838
        %v840 = vmul.f32 %v832, %v839
        %842 = vrot.lane.b32.xlu0 %v732, 120
        %v843 = vpop.permute.xlu0 %842
        %v846 = vsel %vm734, %v840, 0
        %848 = vmatpush.msra.mxu0 0.0
        %849 = vmatpush.msra.mxu0 0.0
        %850 = vmatpush.msra.mxu0 0.0
        %851 = vmatpush.msra.mxu0 0.0
        %852 = vmatpush.msra.mxu0 0.0
        %853 = vmatpush.msra.mxu0 0.0
        %854 = vmatpush.msra.mxu0 0.0
        %855 = vmatpush.msra.mxu0 0.0
        %856 = vmatpush.msra.mxu0 0.0
        %857 = vmatpush.msra.mxu0 0.0
        %858 = vmatpush.msra.mxu0 0.0
        %859 = vmatpush.msra.mxu0 0.0
        %860 = vmatpush.msra.mxu0 0.0
        %861 = vmatpush.msra.mxu0 0.0
        %862 = vmatpush.msra.mxu0 0.0
        %863 = vmatpush.msra.mxu0 %v843
        %864 = vmatmul.f32.gmra.mxu0 %v846
        %v865 = vpop.f32.mrf.mxu0
        %v866 = vadd.f32 0.0, %v865
        %867 = vdwg.mxu0
        %869 = vrot.lane.b32.xlu0 %v866, 8
        %v870 = vpop.permute.xlu0 %869
        %vm872 = vcmask 130112
        %873 = vst.msk [vmem:[#allocation2] sm:$0xff] %vm872, %v870
        %v874 = vadd.f32 %v774, %v840
        %875 = vrot.lane.b32.xlu0 %v670, 112
        %v876 = vpop.permute.xlu0 %875
        %877 = vrot.lane.b32.xlu0 %v701, 112
        %v878 = vpop.permute.xlu0 %877
        %v879 = vsel %vm734, %v876, 0
        %v881 = vsel %vm734, %v878, 0
        %883 = vmatpush.xpose.msra.mxu0 0.0
        %884 = vmatpush.xpose.msra.mxu0 0.0
        %885 = vmatpush.xpose.msra.mxu0 0.0
        %886 = vmatpush.xpose.msra.mxu0 0.0
        %887 = vmatpush.xpose.msra.mxu0 0.0
        %888 = vmatpush.xpose.msra.mxu0 0.0
        %889 = vmatpush.xpose.msra.mxu0 0.0
        %890 = vmatpush.xpose.msra.mxu0 0.0
        %891 = vmatpush.xpose.msra.mxu0 0.0
        %892 = vmatpush.xpose.msra.mxu0 0.0
        %893 = vmatpush.xpose.msra.mxu0 0.0
        %894 = vmatpush.xpose.msra.mxu0 0.0
        %895 = vmatpush.xpose.msra.mxu0 0.0
        %896 = vmatpush.xpose.msra.mxu0 0.0
        %897 = vmatpush.xpose.msra.mxu0 0.0
        %898 = vmatpush.xpose.msra.mxu0 %v881
        %899 = vmatmul.f32.gmra.mxu0 %v879
        %v900 = vpop.f32.mrf.mxu0
        %v901 = vadd.f32 0.0, %v900
        %902 = vdwg.mxu0
        %v903 = vsel %vm734, %v901, -inf
        %904 = vmax.xlane.f32.xlu0 %v903
        %v905 = vpop.xlane.xlu0 %904
        %v906 = vsub.f32 %v901, %v905
        %v907 = vmul.f32 %v906, 1.442695
        %v908 = vpow.pop %v907
        %v909 = vsel %vm734, %v908, 0.0
        %910 = vadd.xlane.f32.xlu0 %v909
        %v911 = vpop.xlane.xlu0 %910
        %v912 = vrcp.pop %v911
        %v913 = vmul.f32 %v911, %v912
        %v914 = vsub.f32 2.0, %v913
        %v915 = vmul.f32 %v912, %v914
        %v916 = vmul.f32 %v908, %v915
        %917 = vrot.lane.b32.xlu0 %v732, 112
        %v918 = vpop.permute.xlu0 %917
        %v921 = vsel %vm734, %v916, 0
        %923 = vmatpush.msra.mxu0 0.0
        %924 = vmatpush.msra.mxu0 0.0
        %925 = vmatpush.msra.mxu0 0.0
        %926 = vmatpush.msra.mxu0 0.0
        %927 = vmatpush.msra.mxu0 0.0
        %928 = vmatpush.msra.mxu0 0.0
        %929 = vmatpush.msra.mxu0 0.0
        %930 = vmatpush.msra.mxu0 0.0
        %931 = vmatpush.msra.mxu0 0.0
        %932 = vmatpush.msra.mxu0 0.0
        %933 = vmatpush.msra.mxu0 0.0
        %934 = vmatpush.msra.mxu0 0.0
        %935 = vmatpush.msra.mxu0 0.0
        %936 = vmatpush.msra.mxu0 0.0
        %937 = vmatpush.msra.mxu0 0.0
        %938 = vmatpush.msra.mxu0 %v918
        %939 = vmatmul.f32.gmra.mxu0 %v921
        %v940 = vpop.f32.mrf.mxu0
        %v941 = vadd.f32 0.0, %v940
        %942 = vdwg.mxu0
        %944 = vrot.lane.b32.xlu0 %v941, 16
        %v945 = vpop.permute.xlu0 %944
        %vm947 = vcmask 195712
        %948 = vst.msk [vmem:[#allocation2] sm:$0xff] %vm947, %v945
        %v949 = vadd.f32 %v874, %v916
        %950 = vrot.lane.b32.xlu0 %v670, 104
        %v951 = vpop.permute.xlu0 %950
        %952 = vrot.lane.b32.xlu0 %v701, 104
        %v953 = vpop.permute.xlu0 %952
        %v954 = vsel %vm734, %v951, 0
        %v956 = vsel %vm734, %v953, 0
        %958 = vmatpush.xpose.msra.mxu0 0.0
        %959 = vmatpush.xpose.msra.mxu0 0.0
        %960 = vmatpush.xpose.msra.mxu0 0.0
        %961 = vmatpush.xpose.msra.mxu0 0.0
        %962 = vmatpush.xpose.msra.mxu0 0.0
        %963 = vmatpush.xpose.msra.mxu0 0.0
        %964 = vmatpush.xpose.msra.mxu0 0.0
        %965 = vmatpush.xpose.msra.mxu0 0.0
        %966 = vmatpush.xpose.msra.mxu0 0.0
        %967 = vmatpush.xpose.msra.mxu0 0.0
        %968 = vmatpush.xpose.msra.mxu0 0.0
        %969 = vmatpush.xpose.msra.mxu0 0.0
        %970 = vmatpush.xpose.msra.mxu0 0.0
        %971 = vmatpush.xpose.msra.mxu0 0.0
        %972 = vmatpush.xpose.msra.mxu0 0.0
        %973 = vmatpush.xpose.msra.mxu0 %v956
        %974 = vmatmul.f32.gmra.mxu0 %v954
        %v975 = vpop.f32.mrf.mxu0
        %v976 = vadd.f32 0.0, %v975
        %977 = vdwg.mxu0
        %v978 = vsel %vm734, %v976, -inf
        %979 = vmax.xlane.f32.xlu0 %v978
        %v980 = vpop.xlane.xlu0 %979
        %v981 = vsub.f32 %v976, %v980
        %v982 = vmul.f32 %v981, 1.442695
        %v983 = vpow.pop %v982
        %v984 = vsel %vm734, %v983, 0.0
        %985 = vadd.xlane.f32.xlu0 %v984
        %v986 = vpop.xlane.xlu0 %985
        %v987 = vrcp.pop %v986
        %v988 = vmul.f32 %v986, %v987
        %v989 = vsub.f32 2.0, %v988
        %v990 = vmul.f32 %v987, %v989
        %v991 = vmul.f32 %v983, %v990
        %992 = vrot.lane.b32.xlu0 %v732, 104
        %v993 = vpop.permute.xlu0 %992
        %v996 = vsel %vm734, %v991, 0
        %998 = vmatpush.msra.mxu0 0.0
        %999 = vmatpush.msra.mxu0 0.0
        %1000 = vmatpush.msra.mxu0 0.0
        %1001 = vmatpush.msra.mxu0 0.0
        %1002 = vmatpush.msra.mxu0 0.0
        %1003 = vmatpush.msra.mxu0 0.0
        %1004 = vmatpush.msra.mxu0 0.0
        %1005 = vmatpush.msra.mxu0 0.0
        %1006 = vmatpush.msra.mxu0 0.0
        %1007 = vmatpush.msra.mxu0 0.0
        %1008 = vmatpush.msra.mxu0 0.0
        %1009 = vmatpush.msra.mxu0 0.0
        %1010 = vmatpush.msra.mxu0 0.0
        %1011 = vmatpush.msra.mxu0 0.0
        %1012 = vmatpush.msra.mxu0 0.0
        %1013 = vmatpush.msra.mxu0 %v993
        %1014 = vmatmul.f32.gmra.mxu0 %v996
        %v1015 = vpop.f32.mrf.mxu0
        %v1016 = vadd.f32 0.0, %v1015
        %1017 = vdwg.mxu0
        %1019 = vrot.lane.b32.xlu0 %v1016, 24
        %v1020 = vpop.permute.xlu0 %1019
        %vm1022 = vcmask 261312
        %1023 = vst.msk [vmem:[#allocation2] sm:$0xff] %vm1022, %v1020
        %v1024 = vadd.f32 %v949, %v991
        %v1025 = vld [vmem:[#allocation2] sm:$0xff]
        %v1026 = vld [vmem:[#allocation14] sm:$0xff]
        %v1027 = vld [vmem:[#allocation14 + $0x8] sm:$0xff]
        %v1028 = vld [vmem:[#allocation14 + $0x10] sm:$0xff]
        %v1029 = vld [vmem:[#allocation14 + $0x18] sm:$0xff]
        %v1030 = vld [vmem:[%s10] sm:$0x1]
        %v1032 = vperm.slane %v1030, 0
        %v1035 = vsel %vm648, %v1025, 0
        %1037 = vmatpush.msra.mxu0 0.0
        %1038 = vmatpush.msra.mxu0 0.0
        %1039 = vmatpush.msra.mxu0 0.0
        %1040 = vmatpush.msra.mxu0 0.0
        %1041 = vmatpush.msra.mxu0 0.0
        %1042 = vmatpush.msra.mxu0 0.0
        %1043 = vmatpush.msra.mxu0 0.0
        %1044 = vmatpush.msra.mxu0 0.0
        %1045 = vmatpush.msra.mxu0 0.0
        %1046 = vmatpush.msra.mxu0 0.0
        %1047 = vmatpush.msra.mxu0 0.0
        %1048 = vmatpush.msra.mxu0 0.0
        %1049 = vmatpush.msra.mxu0 %v1029
        %1050 = vmatpush.msra.mxu0 %v1028
        %1051 = vmatpush.msra.mxu0 %v1027
        %1052 = vmatpush.msra.mxu0 %v1026
        %1053 = vmatmul.f32.gmra.mxu0 %v1035
        %v1054 = vpop.f32.mrf.mxu0
        %v1055 = vadd.f32 %v1032, %v1054
        %1056 = vdwg.mxu0
        %v1057 = vadd.f32 %v1055, %v637
        %v1058 = vsel %vm648, %v1057, 0.0
        %1059 = vadd.xlane.f32.xlu0 %v1058
        %v1060 = vpop.xlane.xlu0 %1059
        %v1061 = vrcp.pop 32.0
        %v1062 = vmul.f32 32.0, %v1061
        %v1063 = vsub.f32 1.0, %v1062
        %v1064 = vmul.f32 %v1061, %v1063
        %v1065 = vadd.f32 %v1061, %v1064
        %vm1066 = vweird.f32 %v1061
        %v1067 = vsel %vm1066, %v1061, %v1065
        %v1068 = vmul.f32 %v1060, %v1067
        %v1069 = vsub.f32 %v1057, %v1068
        %v1070 = vmul.f32 %v1069, %v1069
        %v1071 = vsel %vm648, %v1070, 0.0
        %1072 = vadd.xlane.f32.xlu0 %v1071
        %v1073 = vpop.xlane.xlu0 %1072
        %v1074 = vmul.f32 %v1073, %v1067
        %v1075 = vadd.f32 %v1074, 1e-05
        %v1076 = vrsqrt.pop %v1075
        %v1077 = vmul.f32 %v1076, %v1075
        %v1078 = vmul.f32 %v1077, %v1076
        %v1079 = vmul.f32 0.5, %v1078
        %v1080 = vsub.f32 1.5, %v1079
        %v1081 = vmul.f32 %v1076, %v1080
        %vm1082 = vweird.f32 %v1075
        %vm1083 = vweird.f32 %v1076
        %vm1084 = vmor %vm1082, %vm1083
        %v1085 = vsel %vm1084, %v1076, %v1081
        %v1086 = vmul.f32 %v1069, %v1085
        %v1087 = vld [vmem:[%s11] sm:$0x1]
        %v1089 = vperm.slane %v1087, 0
        %v1091 = vmul.f32 %v1086, %v1089
        %v1092 = vld [vmem:[%s12] sm:$0x1]
        %v1094 = vperm.slane %v1092, 0
        %v1096 = vadd.f32 %v1091, %v1094
        %1097 = vst.msk [vmem:[%s629] sm:$0xff] %vm648, %v1096
        %v1098 = vmul.f32 %v1024, 0.25
        %1099 = vst.msk [vmem:[%s636] sm:$0xff] %vm734, %v1098
        %s1100 = sand.u32 %s336, 1
        %s1101 = scalar_lea.sflag [#allocation5], %s1100
        %s1102 = sand.u32 %s336, 1
        %s1103 = smul.addr %s1102, 8
        %s1104 = scalar_lea.vmem [#allocation15], %s1103
        %s1105 = sand.u32 %s362, 1
        %s1106 = scalar_lea.sflag [#allocation17], %s1105
        %s1107 = sand.u32 %s362, 1
        %s1108 = smul.addr %s1107, 8
        %s1109 = scalar_lea.vmem [#allocation16], %s1108
        // Predicated region
        $region101: #{tpu_custom_call.1} parent=71 // pred_check
          %p1110 = pneg %p346
        $region102: #{tpu_custom_call.1} parent=71 // pred_check_branch
          %1112 = sbr.rel (%p1110) target = $region104
        $region103: #{tpu_custom_call.1} parent=71 // pred_region
          %1114 = vsyncadd %s1101, 0
          %s1115 = smul.addr %s40, 8
          %s1116 = scalar_lea.hbm %s13, %s1115
          %s1118 = sshll.u32 %s1104, 4
          %s1119 = int_to_ptr.vmem [resolvable:$true] %s1118
          %s1120 = sshll.u32 %s1116, 4
          %s1121 = int_to_ptr.hbm [resolvable:$true] %s1120
          %1123 = dma.vmem_to_hbm [thread:$0]  %s1119, 128, %s1121, %s1101
        $region104: #{tpu_custom_call.1} parent=71 // pred_fallthru
          _
        // Predicated region
        $region105: #{tpu_custom_call.1} parent=71 // pred_check
          %p1124 = pneg %p372
        $region106: #{tpu_custom_call.1} parent=71 // pred_check_branch
          %1126 = sbr.rel (%p1124) target = $region108
        $region107: #{tpu_custom_call.1} parent=71 // pred_region
          %1128 = vsyncadd %s1106, 0
          %s1129 = smul.addr %s40, 8
          %s1130 = scalar_lea.hbm %s14, %s1129
          %s1132 = sshll.u32 %s1109, 4
          %s1133 = int_to_ptr.vmem [resolvable:$true] %s1132
          %s1134 = sshll.u32 %s1130, 4
          %s1135 = int_to_ptr.hbm [resolvable:$true] %s1134
          %1137 = dma.vmem_to_hbm [thread:$0]  %s1133, 128, %s1135, %s1106
        $region108: #{tpu_custom_call.1} parent=71 // pred_fallthru
          _
      $region72: #{tpu_custom_call.1} parent=5 // pred_fallthru
        _
      %p1138 = scmp.le.s32.totalorder 2, %s35
      // Predicated region
      $region109: #{tpu_custom_call.1} parent=5 // pred_check
        %p1139 = pneg %p1138
      $region110: #{tpu_custom_call.1} parent=5 // pred_check_branch
        %1141 = sbr.rel (%p1139) target = $region112
      $region111: #{tpu_custom_call.1} parent=5 // pred_region
        %s1142 = ssub.s32 %s35, 2
        // Predicated region
        $region113: #{tpu_custom_call.1} parent=111 // pred_check
          %p1143 = pneg %p352
        $region114: #{tpu_custom_call.1} parent=111 // pred_check_branch
          %1145 = sbr.rel (%p1143) target = $region116
        $region115: #{tpu_custom_call.1} parent=111 // pred_region
          %s1146 = sand.u32 %s337, 1
          %s1147 = scalar_lea.sflag [#allocation5], %s1146
          %s1148 = sand.u32 %s337, 1
          %s1149 = smul.addr %s1148, 8
          %s1150 = scalar_lea.vmem [#allocation15], %s1149
          %1152 = dma.done %s1147, 128
        $region116: #{tpu_custom_call.1} parent=111 // pred_fallthru
          _
        // Predicated region
        $region117: #{tpu_custom_call.1} parent=111 // pred_check
          %p1153 = pneg %p378
        $region118: #{tpu_custom_call.1} parent=111 // pred_check_branch
          %1155 = sbr.rel (%p1153) target = $region120
        $region119: #{tpu_custom_call.1} parent=111 // pred_region
          %s1156 = sand.u32 %s363, 1
          %s1157 = scalar_lea.sflag [#allocation17], %s1156
          %s1158 = sand.u32 %s363, 1
          %s1159 = smul.addr %s1158, 8
          %s1160 = scalar_lea.vmem [#allocation16], %s1159
          %1162 = dma.done %s1157, 128
        $region120: #{tpu_custom_call.1} parent=111 // pred_fallthru
          _
      $region112: #{tpu_custom_call.1} parent=5 // pred_fallthru
        _
    $region6: #{tpu_custom_call.1} parent=1 // loop_footer
      %s39 = sadd.s32 1, %s35
    $region7: #{tpu_custom_call.1} parent=1 // loop_footer_branch
      %34 = sbr.rel target = $region3
    $region8: #{tpu_custom_call.1} parent=1 // loop_exit
      _
    %1163 = vsyncpa [#allocation4], 1
    %s1164 = scalar_lea.sflag [#allocation4], 1
    %1165 = vsyncpa %s1164, 1
    %1166 = vsyncpa [#allocation7], 1
    %s1167 = scalar_lea.sflag [#allocation7], 1
    %1168 = vsyncpa %s1167, 1
    %1169 = vsyncpa [#allocation10], 1
    %1170 = vsyncpa [#allocation13], 1
    %1171 = vsyncpa [#allocation5], 1
    %s1172 = scalar_lea.sflag [#allocation5], 1
    %1173 = vsyncpa %s1172, 1
    %1174 = vsyncpa [#allocation17], 1
    %s1175 = scalar_lea.sflag [#allocation17], 1
    %1176 = vsyncpa %s1175, 1

</llo_original>
